<compile_context>
chip_gen: v6e
topology: v6e:2x2x1
jax: 0.10.0
libtpu: 0.0.40
codegen_flags: <defaults>
</compile_context>

<pallas_src>
import functools

import numpy as np
import jax
import jax.numpy as jnp
from jax.experimental import pallas as pl
from jax.experimental.pallas import tpu as pltpu

# ---- module hyper-parameters (small, consistent with DCGRUCell.__init__) ----
BATCH = 2
NUM_NODES = 16
INPUT_DIM = 4
NUM_UNITS = 32
MAX_DIFFUSION_STEP = 2
NUM_SUPPORTS = 1  # filter_type='laplacian' -> one support
NUM_MATRICES = NUM_SUPPORTS * MAX_DIFFUSION_STEP + 1  # T_0 .. T_K


# ----------------------------- Pallas kernel --------------------------------
def _dcgru_kernel(z_ref, h_ref, s_ref, w_ru_ref, w_cx_ref, w_ch_ref,
                  b_ru_ref, b_c_ref, o_ref, *,
                  max_diffusion_step, input_dim, num_units):
    """Single invocation; batch folded into rows; all operands VMEM-resident."""
    K = max_diffusion_step
    D = input_dim
    U = num_units

    Z = z_ref[...]        # (B*N, D+U)  rows = b*N + n, cols = [x | h]
    H = h_ref[...]        # (B*N, U)    hidden state
    S = s_ref[...]        # (B*N, B*N)  block-diagonal scaled Laplacian

    def cheb(t0):
        # Chebyshev diffusion T_0..T_K along the (batch-folded) node axis.
        ts = [t0]
        if K >= 1:
            t1 = jnp.dot(S, t0, preferred_element_type=jnp.float32)
            ts.append(t1)
            tkm2, tkm1 = t0, t1
            for _ in range(2, K + 1):
                tk = 2.0 * jnp.dot(S, tkm1,
                                   preferred_element_type=jnp.float32) - tkm2
                ts.append(tk)
                tkm2, tkm1 = tkm1, tk
        return ts

    # Diffusion of [x | h]: one matmul per order covers both batch elements
    # and both feature groups.
    tz = cheb(Z)

    # Fused reset|update gate projection: sum_k T_k @ W_k, output width 2U.
    gate = b_ru_ref[...]                                   # (1, 2U), broadcast
    for m in range(len(tz)):
        gate = gate + jnp.dot(tz[m], w_ru_ref[m],
                              preferred_element_type=jnp.float32)
    gate = jax.nn.sigmoid(gate)                            # (B*N, 2U)
    r = gate[:, :U]
    u = gate[:, U:]

    # Candidate state: graph-conv of concat([x, r*h]).  The x part reuses tz
    # (diffusion of a concat == concat of diffusions); only r*h needs a fresh
    # Chebyshev pass.
    tp = cheb(r * H)
    cand = b_c_ref[...]                                    # (1, U), broadcast
    for m in range(len(tz)):
        cand = cand + jnp.dot(tz[m][:, :D], w_cx_ref[m],
                              preferred_element_type=jnp.float32)
        cand = cand + jnp.dot(tp[m], w_ch_ref[m],
                              preferred_element_type=jnp.float32)
    c = jnp.tanh(cand)

    # Single lane-dense slab store of the new state.
    o_ref[...] = u * H + (1.0 - u) * c


# ------------------------------ JAX wrapper ----------------------------------
@jax.jit
def dcgru_cell(inputs_flat, hx_flat, support, fused_weights):
    B = inputs_flat.shape[0]
    N, D, U = NUM_NODES, INPUT_DIM, NUM_UNITS
    F = D + U
    x3 = inputs_flat.reshape(B, N, D).astype(jnp.float32)
    h3 = hx_flat.reshape(B, N, U).astype(jnp.float32)
    z = jnp.concatenate([x3, h3], axis=2).reshape(B * N, F)   # [x | h], batch in rows
    h2 = h3.reshape(B * N, U)
    # Fold batch into the row axis -> block-diagonal support.
    s_bd = jnp.kron(jnp.eye(B, dtype=jnp.float32), support.astype(jnp.float32))
    w_ru, w_cx, w_ch, b_ru, b_c = fused_weights

    kernel = functools.partial(
        _dcgru_kernel,
        max_diffusion_step=MAX_DIFFUSION_STEP, input_dim=D, num_units=U)

    vmem = functools.partial(pl.BlockSpec, memory_space=pltpu.MemorySpace.VMEM)
    out = pl.pallas_call(
        kernel,
        out_shape=jax.ShapeDtypeStruct((B * N, U), jnp.float32),
        in_specs=[vmem() for _ in range(8)],
        out_specs=vmem(),
        input_output_aliases={1: 0},    # hidden-state input -> new-state output
    )(z, h2, s_bd, w_ru, w_cx, w_ch, b_ru, b_c)
    return out.reshape(B, N * U)


# ----------------------- parameter / support construction --------------------
def make_params(key):
    """Deterministic synthetic parameters matching DCGRUCell.__init__ shapes."""
    D, U, M = INPUT_DIM, NUM_UNITS, NUM_MATRICES
    in_gconv = (U + D) * M
    k1, k2 = jax.random.split(key)
    std_ru = (2.0 / (in_gconv + 2 * U)) ** 0.5          # xavier_normal_, gain=1
    W_ru = jax.random.normal(k1, (in_gconv, 2 * U), jnp.float32) * std_ru
    b_ru = jnp.ones((2 * U,), jnp.float32)              # constant_ val=1.0
    std_c = (2.0 / (in_gconv + U)) ** 0.5
    W_c = jax.random.normal(k2, (in_gconv, U), jnp.float32) * std_c
    b_c = jnp.zeros((U,), jnp.float32)                  # constant_ val=0.0
    return W_ru, b_ru, W_c, b_c


def fuse_params(W_ru, b_ru, W_c, b_c):
    """Wrapper-side weight re-layout (torch row index of W is feat*M + k).

    Produces diffusion-order-major slabs with the r|u gate columns kept
    contiguous (fused gate matmul) and the candidate weights split into the
    x part and the (r*h) part.
    """
    D, U, M = INPUT_DIM, NUM_UNITS, NUM_MATRICES
    F = D + U
    w_ru = jnp.transpose(W_ru.reshape(F, M, 2 * U), (1, 0, 2))   # (M, F, 2U)
    wc3 = jnp.transpose(W_c.reshape(F, M, U), (1, 0, 2))         # (M, F, U)
    w_cx = wc3[:, :D, :]                                         # (M, D, U)
    w_ch = wc3[:, D:, :]                                         # (M, U, U)
    return (w_ru, w_cx, w_ch,
            b_ru.reshape(1, 2 * U), b_c.reshape(1, U))


def scaled_laplacian(adj):
    """graph.scaled_laplacian(adj, lambda_max=None), computed on host."""
    a = np.maximum(adj, adj.T)
    d = a.sum(axis=1)
    d_inv_sqrt = np.where(d > 0, 1.0 / np.sqrt(d), 0.0)
    n = a.shape[0]
    lap = np.eye(n) - (d_inv_sqrt[:, None] * a) * d_inv_sqrt[None, :]
    lambda_max = float(np.linalg.eigvalsh(lap).max())
    return (2.0 / lambda_max) * lap - np.eye(n)


# -------------------------- pure-JAX reference (torch-faithful) --------------
def _gconv_ref(support, inputs3, state3, W, b, out_size, K):
    B, N, _ = inputs3.shape
    x = jnp.concatenate([inputs3, state3], axis=2)
    F = x.shape[2]
    x0 = jnp.transpose(x, (1, 2, 0)).reshape(N, F * B)
    xs = [x0]
    if K > 0:
        x1 = support @ x0
        xs.append(x1)
        for _ in range(2, K + 1):
            x2 = 2.0 * (support @ x1) - x0
            xs.append(x2)
            x1, x0 = x2, x1
    M = len(xs)
    xst = jnp.stack(xs).reshape(M, N, F, B)
    xst = jnp.transpose(xst, (3, 1, 2, 0)).reshape(B * N, F * M)
    y = xst @ W + b
    return y.reshape(B, N * out_size)


def dcgru_ref(inputs_flat, hx_flat, support, W_ru, b_ru, W_c, b_c):
    B = inputs_flat.shape[0]
    N, D, U, K = NUM_NODES, INPUT_DIM, NUM_UNITS, MAX_DIFFUSION_STEP
    x3 = inputs_flat.reshape(B, N, D)
    h3 = hx_flat.reshape(B, N, U)
    value = jax.nn.sigmoid(_gconv_ref(support, x3, h3, W_ru, b_ru, 2 * U, K))
    value = value.reshape(B, N, 2 * U)
    r = value[..., :U].reshape(B, N * U)
    u = value[..., U:].reshape(B, N * U)
    c = _gconv_ref(support, x3, (r * hx_flat).reshape(B, N, U), W_c, b_c, U, K)
    c = jnp.tanh(c)
    return u * hx_flat + (1.0 - u) * c


# ---------------------------------- main --------------------------------------
if __name__ == "__main__":
    key = jax.random.PRNGKey(0)
    k_adj, k_x, k_h, k_p = jax.random.split(key, 4)

    adj = np.asarray(
        jax.device_get(jax.random.uniform(k_adj, (NUM_NODES, NUM_NODES))),
        dtype=np.float64)
    np.fill_diagonal(adj, 0.0)
    support = jnp.asarray(scaled_laplacian(adj), dtype=jnp.float32)

    inputs = jax.random.normal(k_x, (BATCH, NUM_NODES * INPUT_DIM), jnp.float32)
    hx = jax.random.normal(k_h, (BATCH, NUM_NODES * NUM_UNITS), jnp.float32)

    W_ru, b_ru, W_c, b_c = make_params(k_p)
    fused = fuse_params(W_ru, b_ru, W_c, b_c)

    out = dcgru_cell(inputs, hx, support, fused)
    out = jax.block_until_ready(out)

    ref = dcgru_ref(inputs, hx, support, W_ru, b_ru, W_c, b_c)
    np.testing.assert_allclose(np.asarray(out), np.asarray(ref),
                               rtol=1e-4, atol=1e-4)
    print("KERNEL_OK")
</pallas_src>

<mosaic_0001>
module attributes {stable_mosaic.version = 11 : i64} {
  func.func @_dcgru_kernel(%arg0: memref<32x36xf32, #tpu.memory_space<vmem>>, %arg1: memref<32x32xf32, #tpu.memory_space<vmem>>, %arg2: memref<32x32xf32, #tpu.memory_space<vmem>>, %arg3: memref<3x36x64xf32, #tpu.memory_space<vmem>>, %arg4: memref<3x4x32xf32, #tpu.memory_space<vmem>>, %arg5: memref<3x32x32xf32, #tpu.memory_space<vmem>>, %arg6: memref<1x64xf32, #tpu.memory_space<vmem>>, %arg7: memref<1x32xf32, #tpu.memory_space<vmem>>, %arg8: memref<32x32xf32, #tpu.memory_space<vmem>>) attributes {dimension_semantics = [], scalar_prefetch = 0 : i64, scratch_operands = 0 : i64, tpu.core_type = #tpu.core_type<tc>} {
    %c0 = arith.constant 0 : index
    %c0_0 = arith.constant 0 : index
    %0 = vector.load %arg0[%c0, %c0_0] : memref<32x36xf32, #tpu.memory_space<vmem>>, vector<32x36xf32>
    %c0_1 = arith.constant 0 : index
    %c0_2 = arith.constant 0 : index
    %1 = vector.load %arg1[%c0_1, %c0_2] : memref<32x32xf32, #tpu.memory_space<vmem>>, vector<32x32xf32>
    %c0_3 = arith.constant 0 : index
    %c0_4 = arith.constant 0 : index
    %2 = vector.load %arg2[%c0_3, %c0_4] : memref<32x32xf32, #tpu.memory_space<vmem>>, vector<32x32xf32>
    %cst = arith.constant dense<0.000000e+00> : vector<32x36xf32>
    %3 = tpu.matmul %2, %0, %cst {dimension_numbers = #tpu.dot_dimension_numbers<[1], [0], [0], [1], [0, 0, 1, 1], [], []>} : vector<32x32xf32>, vector<32x36xf32>, vector<32x36xf32> -> vector<32x36xf32>
    %cst_5 = arith.constant dense<0.000000e+00> : vector<32x36xf32>
    %4 = tpu.matmul %2, %3, %cst_5 {dimension_numbers = #tpu.dot_dimension_numbers<[1], [0], [0], [1], [0, 0, 1, 1], [], []>} : vector<32x32xf32>, vector<32x36xf32>, vector<32x36xf32> -> vector<32x36xf32>
    %cst_6 = arith.constant 2.000000e+00 : f32
    %5 = vector.broadcast %cst_6 : f32 to vector<32x36xf32>
    %6 = arith.mulf %5, %4 : vector<32x36xf32>
    %7 = arith.subf %6, %0 : vector<32x36xf32>
    %c0_7 = arith.constant 0 : index
    %c0_8 = arith.constant 0 : index
    %8 = vector.load %arg6[%c0_7, %c0_8] : memref<1x64xf32, #tpu.memory_space<vmem>>, vector<1x64xf32>
    %c0_9 = arith.constant 0 : index
    %c0_10 = arith.constant 0 : index
    %c0_11 = arith.constant 0 : index
    %9 = vector.load %arg3[%c0_9, %c0_10, %c0_11] : memref<3x36x64xf32, #tpu.memory_space<vmem>>, vector<1x36x64xf32>
    %10 = vector.shape_cast %9 : vector<1x36x64xf32> to vector<36x64xf32>
    %cst_12 = arith.constant dense<0.000000e+00> : vector<32x64xf32>
    %11 = tpu.matmul %0, %10, %cst_12 {dimension_numbers = #tpu.dot_dimension_numbers<[1], [0], [0], [1], [0, 0, 1, 1], [], []>} : vector<32x36xf32>, vector<36x64xf32>, vector<32x64xf32> -> vector<32x64xf32>
    %12 = vector.broadcast %8 : vector<1x64xf32> to vector<32x64xf32>
    %13 = arith.addf %12, %11 : vector<32x64xf32>
    %c1 = arith.constant 1 : index
    %c0_13 = arith.constant 0 : index
    %c0_14 = arith.constant 0 : index
    %14 = vector.load %arg3[%c1, %c0_13, %c0_14] : memref<3x36x64xf32, #tpu.memory_space<vmem>>, vector<1x36x64xf32>
    %15 = vector.shape_cast %14 : vector<1x36x64xf32> to vector<36x64xf32>
    %cst_15 = arith.constant dense<0.000000e+00> : vector<32x64xf32>
    %16 = tpu.matmul %3, %15, %cst_15 {dimension_numbers = #tpu.dot_dimension_numbers<[1], [0], [0], [1], [0, 0, 1, 1], [], []>} : vector<32x36xf32>, vector<36x64xf32>, vector<32x64xf32> -> vector<32x64xf32>
    %17 = arith.addf %13, %16 : vector<32x64xf32>
    %c2 = arith.constant 2 : index
    %c0_16 = arith.constant 0 : index
    %c0_17 = arith.constant 0 : index
    %18 = vector.load %arg3[%c2, %c0_16, %c0_17] : memref<3x36x64xf32, #tpu.memory_space<vmem>>, vector<1x36x64xf32>
    %19 = vector.shape_cast %18 : vector<1x36x64xf32> to vector<36x64xf32>
    %cst_18 = arith.constant dense<0.000000e+00> : vector<32x64xf32>
    %20 = tpu.matmul %7, %19, %cst_18 {dimension_numbers = #tpu.dot_dimension_numbers<[1], [0], [0], [1], [0, 0, 1, 1], [], []>} : vector<32x36xf32>, vector<36x64xf32>, vector<32x64xf32> -> vector<32x64xf32>
    %21 = arith.addf %17, %20 : vector<32x64xf32>
    %22 = arith.negf %21 : vector<32x64xf32>
    %23 = math.exp %22 : vector<32x64xf32>
    %cst_19 = arith.constant 1.000000e+00 : f32
    %24 = vector.broadcast %cst_19 : f32 to vector<32x64xf32>
    %25 = arith.addf %24, %23 : vector<32x64xf32>
    %26 = arith.divf %24, %25 : vector<32x64xf32>
    %27 = vector.extract_strided_slice %26 {offsets = [0, 0], sizes = [32, 32], strides = [1, 1]} : vector<32x64xf32> to vector<32x32xf32>
    %28 = vector.extract_strided_slice %26 {offsets = [0, 32], sizes = [32, 32], strides = [1, 1]} : vector<32x64xf32> to vector<32x32xf32>
    %29 = arith.mulf %27, %1 : vector<32x32xf32>
    %cst_20 = arith.constant dense<0.000000e+00> : vector<32x32xf32>
    %30 = tpu.matmul %2, %29, %cst_20 {dimension_numbers = #tpu.dot_dimension_numbers<[1], [0], [0], [1], [0, 0, 1, 1], [], []>} : vector<32x32xf32>, vector<32x32xf32>, vector<32x32xf32> -> vector<32x32xf32>
    %cst_21 = arith.constant dense<0.000000e+00> : vector<32x32xf32>
    %31 = tpu.matmul %2, %30, %cst_21 {dimension_numbers = #tpu.dot_dimension_numbers<[1], [0], [0], [1], [0, 0, 1, 1], [], []>} : vector<32x32xf32>, vector<32x32xf32>, vector<32x32xf32> -> vector<32x32xf32>
    %cst_22 = arith.constant 2.000000e+00 : f32
    %32 = vector.broadcast %cst_22 : f32 to vector<32x32xf32>
    %33 = arith.mulf %32, %31 : vector<32x32xf32>
    %34 = arith.subf %33, %29 : vector<32x32xf32>
    %c0_23 = arith.constant 0 : index
    %c0_24 = arith.constant 0 : index
    %35 = vector.load %arg7[%c0_23, %c0_24] : memref<1x32xf32, #tpu.memory_space<vmem>>, vector<1x32xf32>
    %36 = vector.extract_strided_slice %0 {offsets = [0, 0], sizes = [32, 4], strides = [1, 1]} : vector<32x36xf32> to vector<32x4xf32>
    %c0_25 = arith.constant 0 : index
    %c0_26 = arith.constant 0 : index
    %c0_27 = arith.constant 0 : index
    %37 = vector.load %arg4[%c0_25, %c0_26, %c0_27] : memref<3x4x32xf32, #tpu.memory_space<vmem>>, vector<1x4x32xf32>
    %38 = vector.shape_cast %37 : vector<1x4x32xf32> to vector<4x32xf32>
    %cst_28 = arith.constant dense<0.000000e+00> : vector<32x32xf32>
    %39 = tpu.matmul %36, %38, %cst_28 {dimension_numbers = #tpu.dot_dimension_numbers<[1], [0], [0], [1], [0, 0, 1, 1], [], []>} : vector<32x4xf32>, vector<4x32xf32>, vector<32x32xf32> -> vector<32x32xf32>
    %40 = vector.broadcast %35 : vector<1x32xf32> to vector<32x32xf32>
    %41 = arith.addf %40, %39 : vector<32x32xf32>
    %c0_29 = arith.constant 0 : index
    %c0_30 = arith.constant 0 : index
    %c0_31 = arith.constant 0 : index
    %42 = vector.load %arg5[%c0_29, %c0_30, %c0_31] : memref<3x32x32xf32, #tpu.memory_space<vmem>>, vector<1x32x32xf32>
    %43 = vector.shape_cast %42 : vector<1x32x32xf32> to vector<32x32xf32>
    %cst_32 = arith.constant dense<0.000000e+00> : vector<32x32xf32>
    %44 = tpu.matmul %29, %43, %cst_32 {dimension_numbers = #tpu.dot_dimension_numbers<[1], [0], [0], [1], [0, 0, 1, 1], [], []>} : vector<32x32xf32>, vector<32x32xf32>, vector<32x32xf32> -> vector<32x32xf32>
    %45 = arith.addf %41, %44 : vector<32x32xf32>
    %46 = vector.extract_strided_slice %3 {offsets = [0, 0], sizes = [32, 4], strides = [1, 1]} : vector<32x36xf32> to vector<32x4xf32>
    %c1_33 = arith.constant 1 : index
    %c0_34 = arith.constant 0 : index
    %c0_35 = arith.constant 0 : index
    %47 = vector.load %arg4[%c1_33, %c0_34, %c0_35] : memref<3x4x32xf32, #tpu.memory_space<vmem>>, vector<1x4x32xf32>
    %48 = vector.shape_cast %47 : vector<1x4x32xf32> to vector<4x32xf32>
    %cst_36 = arith.constant dense<0.000000e+00> : vector<32x32xf32>
    %49 = tpu.matmul %46, %48, %cst_36 {dimension_numbers = #tpu.dot_dimension_numbers<[1], [0], [0], [1], [0, 0, 1, 1], [], []>} : vector<32x4xf32>, vector<4x32xf32>, vector<32x32xf32> -> vector<32x32xf32>
    %50 = arith.addf %45, %49 : vector<32x32xf32>
    %c1_37 = arith.constant 1 : index
    %c0_38 = arith.constant 0 : index
    %c0_39 = arith.constant 0 : index
    %51 = vector.load %arg5[%c1_37, %c0_38, %c0_39] : memref<3x32x32xf32, #tpu.memory_space<vmem>>, vector<1x32x32xf32>
    %52 = vector.shape_cast %51 : vector<1x32x32xf32> to vector<32x32xf32>
    %cst_40 = arith.constant dense<0.000000e+00> : vector<32x32xf32>
    %53 = tpu.matmul %30, %52, %cst_40 {dimension_numbers = #tpu.dot_dimension_numbers<[1], [0], [0], [1], [0, 0, 1, 1], [], []>} : vector<32x32xf32>, vector<32x32xf32>, vector<32x32xf32> -> vector<32x32xf32>
    %54 = arith.addf %50, %53 : vector<32x32xf32>
    %55 = vector.extract_strided_slice %7 {offsets = [0, 0], sizes = [32, 4], strides = [1, 1]} : vector<32x36xf32> to vector<32x4xf32>
    %c2_41 = arith.constant 2 : index
    %c0_42 = arith.constant 0 : index
    %c0_43 = arith.constant 0 : index
    %56 = vector.load %arg4[%c2_41, %c0_42, %c0_43] : memref<3x4x32xf32, #tpu.memory_space<vmem>>, vector<1x4x32xf32>
    %57 = vector.shape_cast %56 : vector<1x4x32xf32> to vector<4x32xf32>
    %cst_44 = arith.constant dense<0.000000e+00> : vector<32x32xf32>
    %58 = tpu.matmul %55, %57, %cst_44 {dimension_numbers = #tpu.dot_dimension_numbers<[1], [0], [0], [1], [0, 0, 1, 1], [], []>} : vector<32x4xf32>, vector<4x32xf32>, vector<32x32xf32> -> vector<32x32xf32>
    %59 = arith.addf %54, %58 : vector<32x32xf32>
    %c2_45 = arith.constant 2 : index
    %c0_46 = arith.constant 0 : index
    %c0_47 = arith.constant 0 : index
    %60 = vector.load %arg5[%c2_45, %c0_46, %c0_47] : memref<3x32x32xf32, #tpu.memory_space<vmem>>, vector<1x32x32xf32>
    %61 = vector.shape_cast %60 : vector<1x32x32xf32> to vector<32x32xf32>
    %cst_48 = arith.constant dense<0.000000e+00> : vector<32x32xf32>
    %62 = tpu.matmul %34, %61, %cst_48 {dimension_numbers = #tpu.dot_dimension_numbers<[1], [0], [0], [1], [0, 0, 1, 1], [], []>} : vector<32x32xf32>, vector<32x32xf32>, vector<32x32xf32> -> vector<32x32xf32>
    %63 = arith.addf %59, %62 : vector<32x32xf32>
    %64 = math.tanh %63 : vector<32x32xf32>
    %65 = arith.mulf %28, %1 : vector<32x32xf32>
    %cst_49 = arith.constant 1.000000e+00 : f32
    %66 = vector.broadcast %cst_49 : f32 to vector<32x32xf32>
    %67 = arith.subf %66, %28 : vector<32x32xf32>
    %68 = arith.mulf %67, %64 : vector<32x32xf32>
    %69 = arith.addf %65, %68 : vector<32x32xf32>
    %c0_50 = arith.constant 0 : index
    %c0_51 = arith.constant 0 : index
    %70 = vector.load %arg8[%c0_50, %c0_51] : memref<32x32xf32, #tpu.memory_space<vmem>>, vector<32x32xf32>
    tpu.vector_store %arg8[%c0_50, %c0_51], %69 {strides = array<i32>} : memref<32x32xf32, #tpu.memory_space<vmem>>, vector<32x32xf32>,
    return
  }
}

</mosaic_0001>

<llo_original>
// kernel: dcgru_cell.1
$region0: #{dcgru_cell.1}
  #allocation0 [shape = 'u32[]', space=smem, size = 0x4, offset = 0x4, fixed_abs, tag = 'smem constant byte address 0x4 - core index']
  #allocation1 [shape = 'u32[144,128]{1,0:T(1,128)}', space=vmem, size = 0x12000, scoped, tag = 'internal scratch']
  %s0 = inlined_call_operand.vmem [shape: f32[32,36], index: 0, kind: input, shape index: {}]
  %s1 = inlined_call_operand.vmem [shape: f32[32,32], index: 1, kind: input, shape index: {}, may-alias: {1,8}]
  %s2 = inlined_call_operand.vmem [shape: f32[32,32], index: 2, kind: input, shape index: {}]
  %s3 = inlined_call_operand.vmem [shape: f32[3,36,64], index: 3, kind: input, shape index: {}]
  %s4 = inlined_call_operand.vmem [shape: f32[3,4,32], index: 4, kind: input, shape index: {}]
  %s5 = inlined_call_operand.vmem [shape: f32[3,32,32], index: 5, kind: input, shape index: {}]
  %s6 = inlined_call_operand.vmem [shape: f32[1,64], index: 6, kind: input, shape index: {}]
  %s7 = inlined_call_operand.vmem [shape: f32[1,32], index: 7, kind: input, shape index: {}]
  %s8 = inlined_call_operand.vmem [shape: f32[32,32], index: 8, kind: output, shape index: {}, may-alias: {1,8}]
  %s9 = sld [smem:[#allocation0]]
  $region42: #{dcgru_cell.1} parent=0
    _
  %s11 = ssub.s32 1, %s9
  %s12 = scalar_select 0, %s11, %s9
  // Predicated region
  $region2: #{dcgru_cell.1} parent=0 // pred_check
    _
  $region3: #{dcgru_cell.1} parent=0 // pred_check_branch
    %14 = sbr.rel (0) target = $region5
  $region4: #{dcgru_cell.1} parent=0 // pred_region
    _
  $region5: #{dcgru_cell.1} parent=0 // pred_fallthru
    _
  // Predicated region
  $region6: #{dcgru_cell.1} parent=0 // pred_check
    _
  $region7: #{dcgru_cell.1} parent=0 // pred_check_branch
    %16 = sbr.rel (0) target = $region9
  $region8: #{dcgru_cell.1} parent=0 // pred_region
    _
  $region9: #{dcgru_cell.1} parent=0 // pred_fallthru
    _
  // Predicated region
  $region10: #{dcgru_cell.1} parent=0 // pred_check
    _
  $region11: #{dcgru_cell.1} parent=0 // pred_check_branch
    %18 = sbr.rel (0) target = $region13
  $region12: #{dcgru_cell.1} parent=0 // pred_region
    _
  $region13: #{dcgru_cell.1} parent=0 // pred_fallthru
    _
  // Predicated region
  $region14: #{dcgru_cell.1} parent=0 // pred_check
    _
  $region15: #{dcgru_cell.1} parent=0 // pred_check_branch
    %20 = sbr.rel (0) target = $region17
  $region16: #{dcgru_cell.1} parent=0 // pred_region
    _
  $region17: #{dcgru_cell.1} parent=0 // pred_fallthru
    _
  // Predicated region
  $region18: #{dcgru_cell.1} parent=0 // pred_check
    _
  $region19: #{dcgru_cell.1} parent=0 // pred_check_branch
    %22 = sbr.rel (0) target = $region21
  $region20: #{dcgru_cell.1} parent=0 // pred_region
    _
  $region21: #{dcgru_cell.1} parent=0 // pred_fallthru
    _
  // Predicated region
  $region22: #{dcgru_cell.1} parent=0 // pred_check
    _
  $region23: #{dcgru_cell.1} parent=0 // pred_check_branch
    %24 = sbr.rel (0) target = $region25
  $region24: #{dcgru_cell.1} parent=0 // pred_region
    _
  $region25: #{dcgru_cell.1} parent=0 // pred_fallthru
    _
  // Predicated region
  $region26: #{dcgru_cell.1} parent=0 // pred_check
    _
  $region27: #{dcgru_cell.1} parent=0 // pred_check_branch
    %26 = sbr.rel (0) target = $region29
  $region28: #{dcgru_cell.1} parent=0 // pred_region
    _
  $region29: #{dcgru_cell.1} parent=0 // pred_fallthru
    _
  // Predicated region
  $region30: #{dcgru_cell.1} parent=0 // pred_check
    _
  $region31: #{dcgru_cell.1} parent=0 // pred_check_branch
    %28 = sbr.rel (0) target = $region33
  $region32: #{dcgru_cell.1} parent=0 // pred_region
    _
  $region33: #{dcgru_cell.1} parent=0 // pred_fallthru
    _
  %v29 = vld [vmem:[%s0] sm:$0xff]
  %v30 = vld [vmem:[%s0 + $0x8] sm:$0xff]
  %v31 = vld [vmem:[%s0 + $0x10] sm:$0xff]
  %v32 = vld [vmem:[%s0 + $0x18] sm:$0xff]
  %v33 = vld [vmem:[%s1] sm:$0xff]
  %v34 = vld [vmem:[%s1 + $0x8] sm:$0xff]
  %v35 = vld [vmem:[%s1 + $0x10] sm:$0xff]
  %v36 = vld [vmem:[%s1 + $0x18] sm:$0xff]
  %v37 = vld [vmem:[%s2] sm:$0xff]
  %v38 = vld [vmem:[%s2 + $0x8] sm:$0xff]
  %v39 = vld [vmem:[%s2 + $0x10] sm:$0xff]
  %v40 = vld [vmem:[%s2 + $0x18] sm:$0xff]
  %vm41 = vcmask 261120
  %v43 = vsel %vm41, %v37, 0
  %v46 = vsel %vm41, %v38, 0
  %v49 = vsel %vm41, %v39, 0
  %v52 = vsel %vm41, %v40, 0
  %54 = vmatprep.subr.mxu0 0.0
  %55 = vmatpush1.msra.mxu0 0.0
  %56 = vmatprep.subr.mxu0 0.0
  %57 = vmatpush1.msra.mxu0 0.0
  %58 = vmatprep.subr.mxu0 0.0
  %59 = vmatpush1.msra.mxu0 0.0
  %60 = vmatprep.subr.mxu0 0.0
  %61 = vmatpush1.msra.mxu0 0.0
  %62 = vmatprep.subr.mxu0 0.0
  %63 = vmatpush1.msra.mxu0 0.0
  %64 = vmatprep.subr.mxu0 0.0
  %65 = vmatpush1.msra.mxu0 0.0
  %66 = vmatprep.subr.mxu0 0.0
  %67 = vmatpush1.msra.mxu0 0.0
  %68 = vmatprep.subr.mxu0 0.0
  %69 = vmatpush1.msra.mxu0 0.0
  %70 = vmatprep.subr.mxu0 0.0
  %71 = vmatpush1.msra.mxu0 0.0
  %72 = vmatprep.subr.mxu0 0.0
  %73 = vmatpush1.msra.mxu0 0.0
  %74 = vmatprep.subr.mxu0 0.0
  %75 = vmatpush1.msra.mxu0 0.0
  %76 = vmatprep.subr.mxu0 0.0
  %77 = vmatpush1.msra.mxu0 0.0
  %78 = vmatprep.subr.mxu0 0.0
  %79 = vmatpush1.msra.mxu0 %v32
  %80 = vmatprep.subr.mxu0 0.0
  %81 = vmatpush1.msra.mxu0 %v31
  %82 = vmatprep.subr.mxu0 0.0
  %83 = vmatpush1.msra.mxu0 %v30
  %84 = vmatprep.subr.mxu0 0.0
  %85 = vmatpush1.msra.mxu0 %v29
  %86 = vmatprep.subr.mxu0 0.0
  %87 = vmatpush2.msra.mxu0 0.0
  %88 = vmatprep.subr.mxu0 0.0
  %89 = vmatpush2.msra.mxu0 0.0
  %90 = vmatprep.subr.mxu0 0.0
  %91 = vmatpush2.msra.mxu0 0.0
  %92 = vmatprep.subr.mxu0 0.0
  %93 = vmatpush2.msra.mxu0 0.0
  %94 = vmatprep.subr.mxu0 0.0
  %95 = vmatpush2.msra.mxu0 0.0
  %96 = vmatprep.subr.mxu0 0.0
  %97 = vmatpush2.msra.mxu0 0.0
  %98 = vmatprep.subr.mxu0 0.0
  %99 = vmatpush2.msra.mxu0 0.0
  %100 = vmatprep.subr.mxu0 0.0
  %101 = vmatpush2.msra.mxu0 0.0
  %102 = vmatprep.subr.mxu0 0.0
  %103 = vmatpush2.msra.mxu0 0.0
  %104 = vmatprep.subr.mxu0 0.0
  %105 = vmatpush2.msra.mxu0 0.0
  %106 = vmatprep.subr.mxu0 0.0
  %107 = vmatpush2.msra.mxu0 0.0
  %108 = vmatprep.subr.mxu0 0.0
  %109 = vmatpush2.msra.mxu0 0.0
  %110 = vmatprep.subr.mxu0 0.0
  %111 = vmatpush2.msra.mxu0 0.0
  %112 = vmatprep.subr.mxu0 0.0
  %113 = vmatpush2.msra.mxu0 0.0
  %114 = vmatprep.subr.mxu0 0.0
  %115 = vmatpush2.msra.mxu0 0.0
  %116 = vmatprep.subr.mxu0 0.0
  %117 = vmatpush2.msra.mxu0 0.0
  %118 = vmatprep.mubr.f32.mxu0 0.0
  %119 = vmatmul.mubr.f32.gmra.mxu0 %v43
  %v120 = vpop.f32.mrf.mxu0
  %v121 = vadd.f32 0.0, %v120
  %v122 = vpop.f32.mrf.mxu0
  %123 = vmatprep.mubr.f32.mxu0 0.0
  %124 = vmatmul.mubr.f32.gmra.mxu0 %v46
  %v125 = vpop.f32.mrf.mxu0
  %v126 = vadd.f32 0.0, %v125
  %v127 = vpop.f32.mrf.mxu0
  %128 = vmatprep.mubr.f32.mxu0 0.0
  %129 = vmatmul.mubr.f32.gmra.mxu0 %v49
  %v130 = vpop.f32.mrf.mxu0
  %v131 = vadd.f32 0.0, %v130
  %v132 = vpop.f32.mrf.mxu0
  %133 = vmatprep.mubr.f32.mxu0 0.0
  %134 = vmatmul.mubr.f32.gmra.mxu0 %v52
  %v135 = vpop.f32.mrf.mxu0
  %v136 = vadd.f32 0.0, %v135
  %v137 = vpop.f32.mrf.mxu0
  %138 = vdwg.mxu0
  %139 = vmatprep.subr.mxu0 0.0
  %140 = vmatpush1.msra.mxu0 0.0
  %141 = vmatprep.subr.mxu0 0.0
  %142 = vmatpush1.msra.mxu0 0.0
  %143 = vmatprep.subr.mxu0 0.0
  %144 = vmatpush1.msra.mxu0 0.0
  %145 = vmatprep.subr.mxu0 0.0
  %146 = vmatpush1.msra.mxu0 0.0
  %147 = vmatprep.subr.mxu0 0.0
  %148 = vmatpush1.msra.mxu0 0.0
  %149 = vmatprep.subr.mxu0 0.0
  %150 = vmatpush1.msra.mxu0 0.0
  %151 = vmatprep.subr.mxu0 0.0
  %152 = vmatpush1.msra.mxu0 0.0
  %153 = vmatprep.subr.mxu0 0.0
  %154 = vmatpush1.msra.mxu0 0.0
  %155 = vmatprep.subr.mxu0 0.0
  %156 = vmatpush1.msra.mxu0 0.0
  %157 = vmatprep.subr.mxu0 0.0
  %158 = vmatpush1.msra.mxu0 0.0
  %159 = vmatprep.subr.mxu0 0.0
  %160 = vmatpush1.msra.mxu0 0.0
  %161 = vmatprep.subr.mxu0 0.0
  %162 = vmatpush1.msra.mxu0 0.0
  %163 = vmatprep.subr.mxu0 0.0
  %164 = vmatpush1.msra.mxu0 %v136
  %165 = vmatprep.subr.mxu0 0.0
  %166 = vmatpush1.msra.mxu0 %v131
  %167 = vmatprep.subr.mxu0 0.0
  %168 = vmatpush1.msra.mxu0 %v126
  %169 = vmatprep.subr.mxu0 0.0
  %170 = vmatpush1.msra.mxu0 %v121
  %171 = vmatprep.subr.mxu0 0.0
  %172 = vmatpush2.msra.mxu0 0.0
  %173 = vmatprep.subr.mxu0 0.0
  %174 = vmatpush2.msra.mxu0 0.0
  %175 = vmatprep.subr.mxu0 0.0
  %176 = vmatpush2.msra.mxu0 0.0
  %177 = vmatprep.subr.mxu0 0.0
  %178 = vmatpush2.msra.mxu0 0.0
  %179 = vmatprep.subr.mxu0 0.0
  %180 = vmatpush2.msra.mxu0 0.0
  %181 = vmatprep.subr.mxu0 0.0
  %182 = vmatpush2.msra.mxu0 0.0
  %183 = vmatprep.subr.mxu0 0.0
  %184 = vmatpush2.msra.mxu0 0.0
  %185 = vmatprep.subr.mxu0 0.0
  %186 = vmatpush2.msra.mxu0 0.0
  %187 = vmatprep.subr.mxu0 0.0
  %188 = vmatpush2.msra.mxu0 0.0
  %189 = vmatprep.subr.mxu0 0.0
  %190 = vmatpush2.msra.mxu0 0.0
  %191 = vmatprep.subr.mxu0 0.0
  %192 = vmatpush2.msra.mxu0 0.0
  %193 = vmatprep.subr.mxu0 0.0
  %194 = vmatpush2.msra.mxu0 0.0
  %195 = vmatprep.subr.mxu0 0.0
  %196 = vmatpush2.msra.mxu0 0.0
  %197 = vmatprep.subr.mxu0 0.0
  %198 = vmatpush2.msra.mxu0 0.0
  %199 = vmatprep.subr.mxu0 0.0
  %200 = vmatpush2.msra.mxu0 0.0
  %201 = vmatprep.subr.mxu0 0.0
  %202 = vmatpush2.msra.mxu0 0.0
  %203 = vmatprep.mubr.f32.mxu0 0.0
  %204 = vmatmul.mubr.f32.gmra.mxu0 %v43
  %v205 = vpop.f32.mrf.mxu0
  %v206 = vadd.f32 0.0, %v205
  %v207 = vpop.f32.mrf.mxu0
  %208 = vmatprep.mubr.f32.mxu0 0.0
  %209 = vmatmul.mubr.f32.gmra.mxu0 %v46
  %v210 = vpop.f32.mrf.mxu0
  %v211 = vadd.f32 0.0, %v210
  %v212 = vpop.f32.mrf.mxu0
  %213 = vmatprep.mubr.f32.mxu0 0.0
  %214 = vmatmul.mubr.f32.gmra.mxu0 %v49
  %v215 = vpop.f32.mrf.mxu0
  %v216 = vadd.f32 0.0, %v215
  %v217 = vpop.f32.mrf.mxu0
  %218 = vmatprep.mubr.f32.mxu0 0.0
  %219 = vmatmul.mubr.f32.gmra.mxu0 %v52
  %v220 = vpop.f32.mrf.mxu0
  %v221 = vadd.f32 0.0, %v220
  %v222 = vpop.f32.mrf.mxu0
  %223 = vdwg.mxu0
  %v224 = vmul.f32 %v206, 2.0
  %v225 = vmul.f32 %v211, 2.0
  %v226 = vmul.f32 %v216, 2.0
  %v227 = vmul.f32 %v221, 2.0
  %v228 = vsub.f32 %v224, %v29
  %v229 = vsub.f32 %v225, %v30
  %v230 = vsub.f32 %v226, %v31
  %v231 = vsub.f32 %v227, %v32
  %v232 = vld [vmem:[%s6] sm:$0x1]
  %v233 = vld [vmem:[%s3] sm:$0xff]
  %v234 = vld [vmem:[%s3 + $0x8] sm:$0xff]
  %v235 = vld [vmem:[%s3 + $0x10] sm:$0xff]
  %v236 = vld [vmem:[%s3 + $0x18] sm:$0xff]
  %v237 = vld [vmem:[%s3 + $0x20] sm:$0xf]
  %vm238 = vcmask 293888
  %v240 = vsel %vm238, %v29, 0
  %v243 = vsel %vm238, %v30, 0
  %v246 = vsel %vm238, %v31, 0
  %v249 = vsel %vm238, %v32, 0
  %vm251 = vcmask 1043456
  %v253 = vsel %vm251, %v237, 0
  %255 = vmatprep.subr.mxu0 0.0
  %256 = vmatpush1.msra.mxu0 0.0
  %257 = vmatprep.subr.mxu0 0.0
  %258 = vmatpush1.msra.mxu0 0.0
  %259 = vmatprep.subr.mxu0 0.0
  %260 = vmatpush1.msra.mxu0 0.0
  %261 = vmatprep.subr.mxu0 0.0
  %262 = vmatpush1.msra.mxu0 0.0
  %263 = vmatprep.subr.mxu0 0.0
  %264 = vmatpush1.msra.mxu0 0.0
  %265 = vmatprep.subr.mxu0 0.0
  %266 = vmatpush1.msra.mxu0 0.0
  %267 = vmatprep.subr.mxu0 0.0
  %268 = vmatpush1.msra.mxu0 0.0
  %269 = vmatprep.subr.mxu0 0.0
  %270 = vmatpush1.msra.mxu0 0.0
  %271 = vmatprep.subr.mxu0 0.0
  %272 = vmatpush1.msra.mxu0 0.0
  %273 = vmatprep.subr.mxu0 0.0
  %274 = vmatpush1.msra.mxu0 0.0
  %275 = vmatprep.subr.mxu0 0.0
  %276 = vmatpush1.msra.mxu0 0.0
  %277 = vmatprep.subr.mxu0 0.0
  %278 = vmatpush1.msra.mxu0 %v253
  %279 = vmatprep.subr.mxu0 0.0
  %280 = vmatpush1.msra.mxu0 %v236
  %281 = vmatprep.subr.mxu0 0.0
  %282 = vmatpush1.msra.mxu0 %v235
  %283 = vmatprep.subr.mxu0 0.0
  %284 = vmatpush1.msra.mxu0 %v234
  %285 = vmatprep.subr.mxu0 0.0
  %286 = vmatpush1.msra.mxu0 %v233
  %287 = vmatprep.subr.mxu0 0.0
  %288 = vmatpush2.msra.mxu0 0.0
  %289 = vmatprep.subr.mxu0 0.0
  %290 = vmatpush2.msra.mxu0 0.0
  %291 = vmatprep.subr.mxu0 0.0
  %292 = vmatpush2.msra.mxu0 0.0
  %293 = vmatprep.subr.mxu0 0.0
  %294 = vmatpush2.msra.mxu0 0.0
  %295 = vmatprep.subr.mxu0 0.0
  %296 = vmatpush2.msra.mxu0 0.0
  %297 = vmatprep.subr.mxu0 0.0
  %298 = vmatpush2.msra.mxu0 0.0
  %299 = vmatprep.subr.mxu0 0.0
  %300 = vmatpush2.msra.mxu0 0.0
  %301 = vmatprep.subr.mxu0 0.0
  %302 = vmatpush2.msra.mxu0 0.0
  %303 = vmatprep.subr.mxu0 0.0
  %304 = vmatpush2.msra.mxu0 0.0
  %305 = vmatprep.subr.mxu0 0.0
  %306 = vmatpush2.msra.mxu0 0.0
  %307 = vmatprep.subr.mxu0 0.0
  %308 = vmatpush2.msra.mxu0 0.0
  %309 = vmatprep.subr.mxu0 0.0
  %310 = vmatpush2.msra.mxu0 0.0
  %311 = vmatprep.subr.mxu0 0.0
  %312 = vmatpush2.msra.mxu0 0.0
  %313 = vmatprep.subr.mxu0 0.0
  %314 = vmatpush2.msra.mxu0 0.0
  %315 = vmatprep.subr.mxu0 0.0
  %316 = vmatpush2.msra.mxu0 0.0
  %317 = vmatprep.subr.mxu0 0.0
  %318 = vmatpush2.msra.mxu0 0.0
  %319 = vmatprep.mubr.f32.mxu0 0.0
  %320 = vmatmul.mubr.f32.gmra.mxu0 %v240
  %v321 = vpop.f32.mrf.mxu0
  %v322 = vadd.f32 0.0, %v321
  %v323 = vpop.f32.mrf.mxu0
  %324 = vmatprep.mubr.f32.mxu0 0.0
  %325 = vmatmul.mubr.f32.gmra.mxu0 %v243
  %v326 = vpop.f32.mrf.mxu0
  %v327 = vadd.f32 0.0, %v326
  %v328 = vpop.f32.mrf.mxu0
  %329 = vmatprep.mubr.f32.mxu0 0.0
  %330 = vmatmul.mubr.f32.gmra.mxu0 %v246
  %v331 = vpop.f32.mrf.mxu0
  %v332 = vadd.f32 0.0, %v331
  %v333 = vpop.f32.mrf.mxu0
  %334 = vmatprep.mubr.f32.mxu0 0.0
  %335 = vmatmul.mubr.f32.gmra.mxu0 %v249
  %v336 = vpop.f32.mrf.mxu0
  %v337 = vadd.f32 0.0, %v336
  %v338 = vpop.f32.mrf.mxu0
  %339 = vdwg.mxu0
  %v341 = vlaneseq
  %v342 = vshrl.u32 %v341, 7
  %v343 = vsub.s32 0, %v342
  %v344 = vrot.slane %v232, %v343
  %v346 = vadd.f32 %v344, %v322
  %v347 = vadd.f32 %v344, %v327
  %v348 = vadd.f32 %v344, %v332
  %v349 = vadd.f32 %v344, %v337
  %s350 = scalar_lea.vmem %s3, 40
  %v351 = vld [vmem:[%s350] sm:$0xff]
  %v352 = vld [vmem:[%s350 + $0x8] sm:$0xff]
  %v353 = vld [vmem:[%s350 + $0x10] sm:$0xff]
  %v354 = vld [vmem:[%s350 + $0x18] sm:$0xff]
  %v355 = vld [vmem:[%s350 + $0x20] sm:$0xf]
  %v357 = vsel %vm238, %v121, 0
  %v360 = vsel %vm238, %v126, 0
  %v363 = vsel %vm238, %v131, 0
  %v366 = vsel %vm238, %v136, 0
  %v369 = vsel %vm251, %v355, 0
  %371 = vmatprep.subr.mxu0 0.0
  %372 = vmatpush1.msra.mxu0 0.0
  %373 = vmatprep.subr.mxu0 0.0
  %374 = vmatpush1.msra.mxu0 0.0
  %375 = vmatprep.subr.mxu0 0.0
  %376 = vmatpush1.msra.mxu0 0.0
  %377 = vmatprep.subr.mxu0 0.0
  %378 = vmatpush1.msra.mxu0 0.0
  %379 = vmatprep.subr.mxu0 0.0
  %380 = vmatpush1.msra.mxu0 0.0
  %381 = vmatprep.subr.mxu0 0.0
  %382 = vmatpush1.msra.mxu0 0.0
  %383 = vmatprep.subr.mxu0 0.0
  %384 = vmatpush1.msra.mxu0 0.0
  %385 = vmatprep.subr.mxu0 0.0
  %386 = vmatpush1.msra.mxu0 0.0
  %387 = vmatprep.subr.mxu0 0.0
  %388 = vmatpush1.msra.mxu0 0.0
  %389 = vmatprep.subr.mxu0 0.0
  %390 = vmatpush1.msra.mxu0 0.0
  %391 = vmatprep.subr.mxu0 0.0
  %392 = vmatpush1.msra.mxu0 0.0
  %393 = vmatprep.subr.mxu0 0.0
  %394 = vmatpush1.msra.mxu0 %v369
  %395 = vmatprep.subr.mxu0 0.0
  %396 = vmatpush1.msra.mxu0 %v354
  %397 = vmatprep.subr.mxu0 0.0
  %398 = vmatpush1.msra.mxu0 %v353
  %399 = vmatprep.subr.mxu0 0.0
  %400 = vmatpush1.msra.mxu0 %v352
  %401 = vmatprep.subr.mxu0 0.0
  %402 = vmatpush1.msra.mxu0 %v351
  %403 = vmatprep.subr.mxu0 0.0
  %404 = vmatpush2.msra.mxu0 0.0
  %405 = vmatprep.subr.mxu0 0.0
  %406 = vmatpush2.msra.mxu0 0.0
  %407 = vmatprep.subr.mxu0 0.0
  %408 = vmatpush2.msra.mxu0 0.0
  %409 = vmatprep.subr.mxu0 0.0
  %410 = vmatpush2.msra.mxu0 0.0
  %411 = vmatprep.subr.mxu0 0.0
  %412 = vmatpush2.msra.mxu0 0.0
  %413 = vmatprep.subr.mxu0 0.0
  %414 = vmatpush2.msra.mxu0 0.0
  %415 = vmatprep.subr.mxu0 0.0
  %416 = vmatpush2.msra.mxu0 0.0
  %417 = vmatprep.subr.mxu0 0.0
  %418 = vmatpush2.msra.mxu0 0.0
  %419 = vmatprep.subr.mxu0 0.0
  %420 = vmatpush2.msra.mxu0 0.0
  %421 = vmatprep.subr.mxu0 0.0
  %422 = vmatpush2.msra.mxu0 0.0
  %423 = vmatprep.subr.mxu0 0.0
  %424 = vmatpush2.msra.mxu0 0.0
  %425 = vmatprep.subr.mxu0 0.0
  %426 = vmatpush2.msra.mxu0 0.0
  %427 = vmatprep.subr.mxu0 0.0
  %428 = vmatpush2.msra.mxu0 0.0
  %429 = vmatprep.subr.mxu0 0.0
  %430 = vmatpush2.msra.mxu0 0.0
  %431 = vmatprep.subr.mxu0 0.0
  %432 = vmatpush2.msra.mxu0 0.0
  %433 = vmatprep.subr.mxu0 0.0
  %434 = vmatpush2.msra.mxu0 0.0
  %435 = vmatprep.mubr.f32.mxu0 0.0
  %436 = vmatmul.mubr.f32.gmra.mxu0 %v357
  %v437 = vpop.f32.mrf.mxu0
  %v438 = vadd.f32 0.0, %v437
  %v439 = vpop.f32.mrf.mxu0
  %440 = vmatprep.mubr.f32.mxu0 0.0
  %441 = vmatmul.mubr.f32.gmra.mxu0 %v360
  %v442 = vpop.f32.mrf.mxu0
  %v443 = vadd.f32 0.0, %v442
  %v444 = vpop.f32.mrf.mxu0
  %445 = vmatprep.mubr.f32.mxu0 0.0
  %446 = vmatmul.mubr.f32.gmra.mxu0 %v363
  %v447 = vpop.f32.mrf.mxu0
  %v448 = vadd.f32 0.0, %v447
  %v449 = vpop.f32.mrf.mxu0
  %450 = vmatprep.mubr.f32.mxu0 0.0
  %451 = vmatmul.mubr.f32.gmra.mxu0 %v366
  %v452 = vpop.f32.mrf.mxu0
  %v453 = vadd.f32 0.0, %v452
  %v454 = vpop.f32.mrf.mxu0
  %455 = vdwg.mxu0
  %v456 = vadd.f32 %v346, %v438
  %v457 = vadd.f32 %v347, %v443
  %v458 = vadd.f32 %v348, %v448
  %v459 = vadd.f32 %v349, %v453
  %s460 = scalar_lea.vmem %s3, 80
  %v461 = vld [vmem:[%s460] sm:$0xff]
  %v462 = vld [vmem:[%s460 + $0x8] sm:$0xff]
  %v463 = vld [vmem:[%s460 + $0x10] sm:$0xff]
  %v464 = vld [vmem:[%s460 + $0x18] sm:$0xff]
  %v465 = vld [vmem:[%s460 + $0x20] sm:$0xf]
  %v467 = vsel %vm238, %v228, 0
  %v470 = vsel %vm238, %v229, 0
  %v473 = vsel %vm238, %v230, 0
  %v476 = vsel %vm238, %v231, 0
  %v479 = vsel %vm251, %v465, 0
  %481 = vmatprep.subr.mxu0 0.0
  %482 = vmatpush1.msra.mxu0 0.0
  %483 = vmatprep.subr.mxu0 0.0
  %484 = vmatpush1.msra.mxu0 0.0
  %485 = vmatprep.subr.mxu0 0.0
  %486 = vmatpush1.msra.mxu0 0.0
  %487 = vmatprep.subr.mxu0 0.0
  %488 = vmatpush1.msra.mxu0 0.0
  %489 = vmatprep.subr.mxu0 0.0
  %490 = vmatpush1.msra.mxu0 0.0
  %491 = vmatprep.subr.mxu0 0.0
  %492 = vmatpush1.msra.mxu0 0.0
  %493 = vmatprep.subr.mxu0 0.0
  %494 = vmatpush1.msra.mxu0 0.0
  %495 = vmatprep.subr.mxu0 0.0
  %496 = vmatpush1.msra.mxu0 0.0
  %497 = vmatprep.subr.mxu0 0.0
  %498 = vmatpush1.msra.mxu0 0.0
  %499 = vmatprep.subr.mxu0 0.0
  %500 = vmatpush1.msra.mxu0 0.0
  %501 = vmatprep.subr.mxu0 0.0
  %502 = vmatpush1.msra.mxu0 0.0
  %503 = vmatprep.subr.mxu0 0.0
  %504 = vmatpush1.msra.mxu0 %v479
  %505 = vmatprep.subr.mxu0 0.0
  %506 = vmatpush1.msra.mxu0 %v464
  %507 = vmatprep.subr.mxu0 0.0
  %508 = vmatpush1.msra.mxu0 %v463
  %509 = vmatprep.subr.mxu0 0.0
  %510 = vmatpush1.msra.mxu0 %v462
  %511 = vmatprep.subr.mxu0 0.0
  %512 = vmatpush1.msra.mxu0 %v461
  %513 = vmatprep.subr.mxu0 0.0
  %514 = vmatpush2.msra.mxu0 0.0
  %515 = vmatprep.subr.mxu0 0.0
  %516 = vmatpush2.msra.mxu0 0.0
  %517 = vmatprep.subr.mxu0 0.0
  %518 = vmatpush2.msra.mxu0 0.0
  %519 = vmatprep.subr.mxu0 0.0
  %520 = vmatpush2.msra.mxu0 0.0
  %521 = vmatprep.subr.mxu0 0.0
  %522 = vmatpush2.msra.mxu0 0.0
  %523 = vmatprep.subr.mxu0 0.0
  %524 = vmatpush2.msra.mxu0 0.0
  %525 = vmatprep.subr.mxu0 0.0
  %526 = vmatpush2.msra.mxu0 0.0
  %527 = vmatprep.subr.mxu0 0.0
  %528 = vmatpush2.msra.mxu0 0.0
  %529 = vmatprep.subr.mxu0 0.0
  %530 = vmatpush2.msra.mxu0 0.0
  %531 = vmatprep.subr.mxu0 0.0
  %532 = vmatpush2.msra.mxu0 0.0
  %533 = vmatprep.subr.mxu0 0.0
  %534 = vmatpush2.msra.mxu0 0.0
  %535 = vmatprep.subr.mxu0 0.0
  %536 = vmatpush2.msra.mxu0 0.0
  %537 = vmatprep.subr.mxu0 0.0
  %538 = vmatpush2.msra.mxu0 0.0
  %539 = vmatprep.subr.mxu0 0.0
  %540 = vmatpush2.msra.mxu0 0.0
  %541 = vmatprep.subr.mxu0 0.0
  %542 = vmatpush2.msra.mxu0 0.0
  %543 = vmatprep.subr.mxu0 0.0
  %544 = vmatpush2.msra.mxu0 0.0
  %545 = vmatprep.mubr.f32.mxu0 0.0
  %546 = vmatmul.mubr.f32.gmra.mxu0 %v467
  %v547 = vpop.f32.mrf.mxu0
  %v548 = vadd.f32 0.0, %v547
  %v549 = vpop.f32.mrf.mxu0
  %550 = vmatprep.mubr.f32.mxu0 0.0
  %551 = vmatmul.mubr.f32.gmra.mxu0 %v470
  %v552 = vpop.f32.mrf.mxu0
  %v553 = vadd.f32 0.0, %v552
  %v554 = vpop.f32.mrf.mxu0
  %555 = vmatprep.mubr.f32.mxu0 0.0
  %556 = vmatmul.mubr.f32.gmra.mxu0 %v473
  %v557 = vpop.f32.mrf.mxu0
  %v558 = vadd.f32 0.0, %v557
  %v559 = vpop.f32.mrf.mxu0
  %560 = vmatprep.mubr.f32.mxu0 0.0
  %561 = vmatmul.mubr.f32.gmra.mxu0 %v476
  %v562 = vpop.f32.mrf.mxu0
  %v563 = vadd.f32 0.0, %v562
  %v564 = vpop.f32.mrf.mxu0
  %565 = vdwg.mxu0
  %v566 = vadd.f32 %v456, %v548
  %v567 = vadd.f32 %v457, %v553
  %v568 = vadd.f32 %v458, %v558
  %v569 = vadd.f32 %v459, %v563
  %v570 = vxor.u32 %v566, 2147483648
  %v571 = vxor.u32 %v567, 2147483648
  %v572 = vxor.u32 %v568, 2147483648
  %v573 = vxor.u32 %v569, 2147483648
  %v574 = vmul.f32 %v570, 1.442695
  %v575 = vpow.pop %v574
  %v576 = vmul.f32 %v571, 1.442695
  %v577 = vpow.pop %v576
  %v578 = vmul.f32 %v572, 1.442695
  %v579 = vpow.pop %v578
  %v580 = vmul.f32 %v573, 1.442695
  %v581 = vpow.pop %v580
  %v582 = vadd.f32 %v575, 1.0
  %v583 = vadd.f32 %v577, 1.0
  %v584 = vadd.f32 %v579, 1.0
  %v585 = vadd.f32 %v581, 1.0
  %v586 = vrcp.pop %v582
  %v587 = vmul.f32 1.0, %v586
  %v588 = vrcp.pop %v583
  %v589 = vmul.f32 1.0, %v588
  %v590 = vrcp.pop %v584
  %v591 = vmul.f32 1.0, %v590
  %v592 = vrcp.pop %v585
  %v593 = vmul.f32 1.0, %v592
  %v594 = vmul.f32 %v587, %v33
  %v595 = vmul.f32 %v589, %v34
  %v596 = vmul.f32 %v591, %v35
  %v597 = vmul.f32 %v593, %v36
  %598 = vmatprep.subr.mxu0 0.0
  %599 = vmatpush1.msra.mxu0 0.0
  %600 = vmatprep.subr.mxu0 0.0
  %601 = vmatpush1.msra.mxu0 0.0
  %602 = vmatprep.subr.mxu0 0.0
  %603 = vmatpush1.msra.mxu0 0.0
  %604 = vmatprep.subr.mxu0 0.0
  %605 = vmatpush1.msra.mxu0 0.0
  %606 = vmatprep.subr.mxu0 0.0
  %607 = vmatpush1.msra.mxu0 0.0
  %608 = vmatprep.subr.mxu0 0.0
  %609 = vmatpush1.msra.mxu0 0.0
  %610 = vmatprep.subr.mxu0 0.0
  %611 = vmatpush1.msra.mxu0 0.0
  %612 = vmatprep.subr.mxu0 0.0
  %613 = vmatpush1.msra.mxu0 0.0
  %614 = vmatprep.subr.mxu0 0.0
  %615 = vmatpush1.msra.mxu0 0.0
  %616 = vmatprep.subr.mxu0 0.0
  %617 = vmatpush1.msra.mxu0 0.0
  %618 = vmatprep.subr.mxu0 0.0
  %619 = vmatpush1.msra.mxu0 0.0
  %620 = vmatprep.subr.mxu0 0.0
  %621 = vmatpush1.msra.mxu0 0.0
  %622 = vmatprep.subr.mxu0 0.0
  %623 = vmatpush1.msra.mxu0 %v597
  %624 = vmatprep.subr.mxu0 0.0
  %625 = vmatpush1.msra.mxu0 %v596
  %626 = vmatprep.subr.mxu0 0.0
  %627 = vmatpush1.msra.mxu0 %v595
  %628 = vmatprep.subr.mxu0 0.0
  %629 = vmatpush1.msra.mxu0 %v594
  %630 = vmatprep.subr.mxu0 0.0
  %631 = vmatpush2.msra.mxu0 0.0
  %632 = vmatprep.subr.mxu0 0.0
  %633 = vmatpush2.msra.mxu0 0.0
  %634 = vmatprep.subr.mxu0 0.0
  %635 = vmatpush2.msra.mxu0 0.0
  %636 = vmatprep.subr.mxu0 0.0
  %637 = vmatpush2.msra.mxu0 0.0
  %638 = vmatprep.subr.mxu0 0.0
  %639 = vmatpush2.msra.mxu0 0.0
  %640 = vmatprep.subr.mxu0 0.0
  %641 = vmatpush2.msra.mxu0 0.0
  %642 = vmatprep.subr.mxu0 0.0
  %643 = vmatpush2.msra.mxu0 0.0
  %644 = vmatprep.subr.mxu0 0.0
  %645 = vmatpush2.msra.mxu0 0.0
  %646 = vmatprep.subr.mxu0 0.0
  %647 = vmatpush2.msra.mxu0 0.0
  %648 = vmatprep.subr.mxu0 0.0
  %649 = vmatpush2.msra.mxu0 0.0
  %650 = vmatprep.subr.mxu0 0.0
  %651 = vmatpush2.msra.mxu0 0.0
  %652 = vmatprep.subr.mxu0 0.0
  %653 = vmatpush2.msra.mxu0 0.0
  %654 = vmatprep.subr.mxu0 0.0
  %655 = vmatpush2.msra.mxu0 0.0
  %656 = vmatprep.subr.mxu0 0.0
  %657 = vmatpush2.msra.mxu0 0.0
  %658 = vmatprep.subr.mxu0 0.0
  %659 = vmatpush2.msra.mxu0 0.0
  %660 = vmatprep.subr.mxu0 0.0
  %661 = vmatpush2.msra.mxu0 0.0
  %662 = vmatprep.mubr.f32.mxu0 0.0
  %663 = vmatmul.mubr.f32.gmra.mxu0 %v43
  %v664 = vpop.f32.mrf.mxu0
  %v665 = vadd.f32 0.0, %v664
  %v666 = vpop.f32.mrf.mxu0
  %667 = vmatprep.mubr.f32.mxu0 0.0
  %668 = vmatmul.mubr.f32.gmra.mxu0 %v46
  %v669 = vpop.f32.mrf.mxu0
  %v670 = vadd.f32 0.0, %v669
  %v671 = vpop.f32.mrf.mxu0
  %672 = vmatprep.mubr.f32.mxu0 0.0
  %673 = vmatmul.mubr.f32.gmra.mxu0 %v49
  %v674 = vpop.f32.mrf.mxu0
  %v675 = vadd.f32 0.0, %v674
  %v676 = vpop.f32.mrf.mxu0
  %677 = vmatprep.mubr.f32.mxu0 0.0
  %678 = vmatmul.mubr.f32.gmra.mxu0 %v52
  %v679 = vpop.f32.mrf.mxu0
  %v680 = vadd.f32 0.0, %v679
  %v681 = vpop.f32.mrf.mxu0
  %682 = vdwg.mxu0
  %683 = vmatprep.subr.mxu0 0.0
  %684 = vmatpush1.msra.mxu0 0.0
  %685 = vmatprep.subr.mxu0 0.0
  %686 = vmatpush1.msra.mxu0 0.0
  %687 = vmatprep.subr.mxu0 0.0
  %688 = vmatpush1.msra.mxu0 0.0
  %689 = vmatprep.subr.mxu0 0.0
  %690 = vmatpush1.msra.mxu0 0.0
  %691 = vmatprep.subr.mxu0 0.0
  %692 = vmatpush1.msra.mxu0 0.0
  %693 = vmatprep.subr.mxu0 0.0
  %694 = vmatpush1.msra.mxu0 0.0
  %695 = vmatprep.subr.mxu0 0.0
  %696 = vmatpush1.msra.mxu0 0.0
  %697 = vmatprep.subr.mxu0 0.0
  %698 = vmatpush1.msra.mxu0 0.0
  %699 = vmatprep.subr.mxu0 0.0
  %700 = vmatpush1.msra.mxu0 0.0
  %701 = vmatprep.subr.mxu0 0.0
  %702 = vmatpush1.msra.mxu0 0.0
  %703 = vmatprep.subr.mxu0 0.0
  %704 = vmatpush1.msra.mxu0 0.0
  %705 = vmatprep.subr.mxu0 0.0
  %706 = vmatpush1.msra.mxu0 0.0
  %707 = vmatprep.subr.mxu0 0.0
  %708 = vmatpush1.msra.mxu0 %v680
  %709 = vmatprep.subr.mxu0 0.0
  %710 = vmatpush1.msra.mxu0 %v675
  %711 = vmatprep.subr.mxu0 0.0
  %712 = vmatpush1.msra.mxu0 %v670
  %713 = vmatprep.subr.mxu0 0.0
  %714 = vmatpush1.msra.mxu0 %v665
  %715 = vmatprep.subr.mxu0 0.0
  %716 = vmatpush2.msra.mxu0 0.0
  %717 = vmatprep.subr.mxu0 0.0
  %718 = vmatpush2.msra.mxu0 0.0
  %719 = vmatprep.subr.mxu0 0.0
  %720 = vmatpush2.msra.mxu0 0.0
  %721 = vmatprep.subr.mxu0 0.0
  %722 = vmatpush2.msra.mxu0 0.0
  %723 = vmatprep.subr.mxu0 0.0
  %724 = vmatpush2.msra.mxu0 0.0
  %725 = vmatprep.subr.mxu0 0.0
  %726 = vmatpush2.msra.mxu0 0.0
  %727 = vmatprep.subr.mxu0 0.0
  %728 = vmatpush2.msra.mxu0 0.0
  %729 = vmatprep.subr.mxu0 0.0
  %730 = vmatpush2.msra.mxu0 0.0
  %731 = vmatprep.subr.mxu0 0.0
  %732 = vmatpush2.msra.mxu0 0.0
  %733 = vmatprep.subr.mxu0 0.0
  %734 = vmatpush2.msra.mxu0 0.0
  %735 = vmatprep.subr.mxu0 0.0
  %736 = vmatpush2.msra.mxu0 0.0
  %737 = vmatprep.subr.mxu0 0.0
  %738 = vmatpush2.msra.mxu0 0.0
  %739 = vmatprep.subr.mxu0 0.0
  %740 = vmatpush2.msra.mxu0 0.0
  %741 = vmatprep.subr.mxu0 0.0
  %742 = vmatpush2.msra.mxu0 0.0
  %743 = vmatprep.subr.mxu0 0.0
  %744 = vmatpush2.msra.mxu0 0.0
  %745 = vmatprep.subr.mxu0 0.0
  %746 = vmatpush2.msra.mxu0 0.0
  %747 = vmatprep.mubr.f32.mxu0 0.0
  %748 = vmatmul.mubr.f32.gmra.mxu0 %v43
  %v749 = vpop.f32.mrf.mxu0
  %v750 = vadd.f32 0.0, %v749
  %v751 = vpop.f32.mrf.mxu0
  %752 = vmatprep.mubr.f32.mxu0 0.0
  %753 = vmatmul.mubr.f32.gmra.mxu0 %v46
  %v754 = vpop.f32.mrf.mxu0
  %v755 = vadd.f32 0.0, %v754
  %v756 = vpop.f32.mrf.mxu0
  %757 = vmatprep.mubr.f32.mxu0 0.0
  %758 = vmatmul.mubr.f32.gmra.mxu0 %v49
  %v759 = vpop.f32.mrf.mxu0
  %v760 = vadd.f32 0.0, %v759
  %v761 = vpop.f32.mrf.mxu0
  %762 = vmatprep.mubr.f32.mxu0 0.0
  %763 = vmatmul.mubr.f32.gmra.mxu0 %v52
  %v764 = vpop.f32.mrf.mxu0
  %v765 = vadd.f32 0.0, %v764
  %v766 = vpop.f32.mrf.mxu0
  %767 = vdwg.mxu0
  %v768 = vmul.f32 %v750, 2.0
  %v769 = vmul.f32 %v755, 2.0
  %v770 = vmul.f32 %v760, 2.0
  %v771 = vmul.f32 %v765, 2.0
  %v772 = vsub.f32 %v768, %v594
  %v773 = vsub.f32 %v769, %v595
  %v774 = vsub.f32 %v770, %v596
  %v775 = vsub.f32 %v771, %v597
  %v776 = vld [vmem:[%s7] sm:$0x1]
  %v777 = vld [vmem:[%s4] sm:$0xf]
  %vm778 = vcmask 31744
  %v779 = vsel %vm778, %v29, 0
  %v781 = vsel %vm778, %v30, 0
  %v783 = vsel %vm778, %v31, 0
  %v785 = vsel %vm778, %v32, 0
  %v788 = vsel %vm251, %v777, 0
  %790 = vmatprep.subr.mxu0 0.0
  %791 = vmatpush1.msra.mxu0 0.0
  %792 = vmatprep.subr.mxu0 0.0
  %793 = vmatpush1.msra.mxu0 0.0
  %794 = vmatprep.subr.mxu0 0.0
  %795 = vmatpush1.msra.mxu0 0.0
  %796 = vmatprep.subr.mxu0 0.0
  %797 = vmatpush1.msra.mxu0 0.0
  %798 = vmatprep.subr.mxu0 0.0
  %799 = vmatpush1.msra.mxu0 0.0
  %800 = vmatprep.subr.mxu0 0.0
  %801 = vmatpush1.msra.mxu0 0.0
  %802 = vmatprep.subr.mxu0 0.0
  %803 = vmatpush1.msra.mxu0 0.0
  %804 = vmatprep.subr.mxu0 0.0
  %805 = vmatpush1.msra.mxu0 0.0
  %806 = vmatprep.subr.mxu0 0.0
  %807 = vmatpush1.msra.mxu0 0.0
  %808 = vmatprep.subr.mxu0 0.0
  %809 = vmatpush1.msra.mxu0 0.0
  %810 = vmatprep.subr.mxu0 0.0
  %811 = vmatpush1.msra.mxu0 0.0
  %812 = vmatprep.subr.mxu0 0.0
  %813 = vmatpush1.msra.mxu0 0.0
  %814 = vmatprep.subr.mxu0 0.0
  %815 = vmatpush1.msra.mxu0 0.0
  %816 = vmatprep.subr.mxu0 0.0
  %817 = vmatpush1.msra.mxu0 0.0
  %818 = vmatprep.subr.mxu0 0.0
  %819 = vmatpush1.msra.mxu0 0.0
  %820 = vmatprep.subr.mxu0 0.0
  %821 = vmatpush1.msra.mxu0 %v788
  %822 = vmatprep.subr.mxu0 0.0
  %823 = vmatpush2.msra.mxu0 0.0
  %824 = vmatprep.subr.mxu0 0.0
  %825 = vmatpush2.msra.mxu0 0.0
  %826 = vmatprep.subr.mxu0 0.0
  %827 = vmatpush2.msra.mxu0 0.0
  %828 = vmatprep.subr.mxu0 0.0
  %829 = vmatpush2.msra.mxu0 0.0
  %830 = vmatprep.subr.mxu0 0.0
  %831 = vmatpush2.msra.mxu0 0.0
  %832 = vmatprep.subr.mxu0 0.0
  %833 = vmatpush2.msra.mxu0 0.0
  %834 = vmatprep.subr.mxu0 0.0
  %835 = vmatpush2.msra.mxu0 0.0
  %836 = vmatprep.subr.mxu0 0.0
  %837 = vmatpush2.msra.mxu0 0.0
  %838 = vmatprep.subr.mxu0 0.0
  %839 = vmatpush2.msra.mxu0 0.0
  %840 = vmatprep.subr.mxu0 0.0
  %841 = vmatpush2.msra.mxu0 0.0
  %842 = vmatprep.subr.mxu0 0.0
  %843 = vmatpush2.msra.mxu0 0.0
  %844 = vmatprep.subr.mxu0 0.0
  %845 = vmatpush2.msra.mxu0 0.0
  %846 = vmatprep.subr.mxu0 0.0
  %847 = vmatpush2.msra.mxu0 0.0
  %848 = vmatprep.subr.mxu0 0.0
  %849 = vmatpush2.msra.mxu0 0.0
  %850 = vmatprep.subr.mxu0 0.0
  %851 = vmatpush2.msra.mxu0 0.0
  %852 = vmatprep.subr.mxu0 0.0
  %853 = vmatpush2.msra.mxu0 0.0
  %854 = vmatprep.mubr.f32.mxu0 0.0
  %855 = vmatmul.mubr.f32.gmra.mxu0 %v779
  %v856 = vpop.f32.mrf.mxu0
  %v857 = vadd.f32 0.0, %v856
  %v858 = vpop.f32.mrf.mxu0
  %859 = vmatprep.mubr.f32.mxu0 0.0
  %860 = vmatmul.mubr.f32.gmra.mxu0 %v781
  %v861 = vpop.f32.mrf.mxu0
  %v862 = vadd.f32 0.0, %v861
  %v863 = vpop.f32.mrf.mxu0
  %864 = vmatprep.mubr.f32.mxu0 0.0
  %865 = vmatmul.mubr.f32.gmra.mxu0 %v783
  %v866 = vpop.f32.mrf.mxu0
  %v867 = vadd.f32 0.0, %v866
  %v868 = vpop.f32.mrf.mxu0
  %869 = vmatprep.mubr.f32.mxu0 0.0
  %870 = vmatmul.mubr.f32.gmra.mxu0 %v785
  %v871 = vpop.f32.mrf.mxu0
  %v872 = vadd.f32 0.0, %v871
  %v873 = vpop.f32.mrf.mxu0
  %874 = vdwg.mxu0
  %v876 = vlaneseq
  %v877 = vshrl.u32 %v876, 7
  %v878 = vsub.s32 0, %v877
  %v879 = vrot.slane %v776, %v878
  %v881 = vadd.f32 %v879, %v857
  %v882 = vadd.f32 %v879, %v862
  %v883 = vadd.f32 %v879, %v867
  %v884 = vadd.f32 %v879, %v872
  %v885 = vld [vmem:[%s5] sm:$0xff]
  %v886 = vld [vmem:[%s5 + $0x8] sm:$0xff]
  %v887 = vld [vmem:[%s5 + $0x10] sm:$0xff]
  %v888 = vld [vmem:[%s5 + $0x18] sm:$0xff]
  %v890 = vsel %vm41, %v594, 0
  %v893 = vsel %vm41, %v595, 0
  %v896 = vsel %vm41, %v596, 0
  %v899 = vsel %vm41, %v597, 0
  %901 = vmatprep.subr.mxu0 0.0
  %902 = vmatpush1.msra.mxu0 0.0
  %903 = vmatprep.subr.mxu0 0.0
  %904 = vmatpush1.msra.mxu0 0.0
  %905 = vmatprep.subr.mxu0 0.0
  %906 = vmatpush1.msra.mxu0 0.0
  %907 = vmatprep.subr.mxu0 0.0
  %908 = vmatpush1.msra.mxu0 0.0
  %909 = vmatprep.subr.mxu0 0.0
  %910 = vmatpush1.msra.mxu0 0.0
  %911 = vmatprep.subr.mxu0 0.0
  %912 = vmatpush1.msra.mxu0 0.0
  %913 = vmatprep.subr.mxu0 0.0
  %914 = vmatpush1.msra.mxu0 0.0
  %915 = vmatprep.subr.mxu0 0.0
  %916 = vmatpush1.msra.mxu0 0.0
  %917 = vmatprep.subr.mxu0 0.0
  %918 = vmatpush1.msra.mxu0 0.0
  %919 = vmatprep.subr.mxu0 0.0
  %920 = vmatpush1.msra.mxu0 0.0
  %921 = vmatprep.subr.mxu0 0.0
  %922 = vmatpush1.msra.mxu0 0.0
  %923 = vmatprep.subr.mxu0 0.0
  %924 = vmatpush1.msra.mxu0 0.0
  %925 = vmatprep.subr.mxu0 0.0
  %926 = vmatpush1.msra.mxu0 %v888
  %927 = vmatprep.subr.mxu0 0.0
  %928 = vmatpush1.msra.mxu0 %v887
  %929 = vmatprep.subr.mxu0 0.0
  %930 = vmatpush1.msra.mxu0 %v886
  %931 = vmatprep.subr.mxu0 0.0
  %932 = vmatpush1.msra.mxu0 %v885
  %933 = vmatprep.subr.mxu0 0.0
  %934 = vmatpush2.msra.mxu0 0.0
  %935 = vmatprep.subr.mxu0 0.0
  %936 = vmatpush2.msra.mxu0 0.0
  %937 = vmatprep.subr.mxu0 0.0
  %938 = vmatpush2.msra.mxu0 0.0
  %939 = vmatprep.subr.mxu0 0.0
  %940 = vmatpush2.msra.mxu0 0.0
  %941 = vmatprep.subr.mxu0 0.0
  %942 = vmatpush2.msra.mxu0 0.0
  %943 = vmatprep.subr.mxu0 0.0
  %944 = vmatpush2.msra.mxu0 0.0
  %945 = vmatprep.subr.mxu0 0.0
  %946 = vmatpush2.msra.mxu0 0.0
  %947 = vmatprep.subr.mxu0 0.0
  %948 = vmatpush2.msra.mxu0 0.0
  %949 = vmatprep.subr.mxu0 0.0
  %950 = vmatpush2.msra.mxu0 0.0
  %951 = vmatprep.subr.mxu0 0.0
  %952 = vmatpush2.msra.mxu0 0.0
  %953 = vmatprep.subr.mxu0 0.0
  %954 = vmatpush2.msra.mxu0 0.0
  %955 = vmatprep.subr.mxu0 0.0
  %956 = vmatpush2.msra.mxu0 0.0
  %957 = vmatprep.subr.mxu0 0.0
  %958 = vmatpush2.msra.mxu0 0.0
  %959 = vmatprep.subr.mxu0 0.0
  %960 = vmatpush2.msra.mxu0 0.0
  %961 = vmatprep.subr.mxu0 0.0
  %962 = vmatpush2.msra.mxu0 0.0
  %963 = vmatprep.subr.mxu0 0.0
  %964 = vmatpush2.msra.mxu0 0.0
  %965 = vmatprep.mubr.f32.mxu0 0.0
  %966 = vmatmul.mubr.f32.gmra.mxu0 %v890
  %v967 = vpop.f32.mrf.mxu0
  %v968 = vadd.f32 0.0, %v967
  %v969 = vpop.f32.mrf.mxu0
  %970 = vmatprep.mubr.f32.mxu0 0.0
  %971 = vmatmul.mubr.f32.gmra.mxu0 %v893
  %v972 = vpop.f32.mrf.mxu0
  %v973 = vadd.f32 0.0, %v972
  %v974 = vpop.f32.mrf.mxu0
  %975 = vmatprep.mubr.f32.mxu0 0.0
  %976 = vmatmul.mubr.f32.gmra.mxu0 %v896
  %v977 = vpop.f32.mrf.mxu0
  %v978 = vadd.f32 0.0, %v977
  %v979 = vpop.f32.mrf.mxu0
  %980 = vmatprep.mubr.f32.mxu0 0.0
  %981 = vmatmul.mubr.f32.gmra.mxu0 %v899
  %v982 = vpop.f32.mrf.mxu0
  %v983 = vadd.f32 0.0, %v982
  %v984 = vpop.f32.mrf.mxu0
  %985 = vdwg.mxu0
  %v986 = vadd.f32 %v881, %v968
  %v987 = vadd.f32 %v882, %v973
  %v988 = vadd.f32 %v883, %v978
  %v989 = vadd.f32 %v884, %v983
  %s990 = scalar_lea.vmem %s4, 4
  %v991 = vld [vmem:[%s990] sm:$0xf]
  %v992 = vsel %vm778, %v121, 0
  %v994 = vsel %vm778, %v126, 0
  %v996 = vsel %vm778, %v131, 0
  %v998 = vsel %vm778, %v136, 0
  %v1001 = vsel %vm251, %v991, 0
  %1003 = vmatprep.subr.mxu0 0.0
  %1004 = vmatpush1.msra.mxu0 0.0
  %1005 = vmatprep.subr.mxu0 0.0
  %1006 = vmatpush1.msra.mxu0 0.0
  %1007 = vmatprep.subr.mxu0 0.0
  %1008 = vmatpush1.msra.mxu0 0.0
  %1009 = vmatprep.subr.mxu0 0.0
  %1010 = vmatpush1.msra.mxu0 0.0
  %1011 = vmatprep.subr.mxu0 0.0
  %1012 = vmatpush1.msra.mxu0 0.0
  %1013 = vmatprep.subr.mxu0 0.0
  %1014 = vmatpush1.msra.mxu0 0.0
  %1015 = vmatprep.subr.mxu0 0.0
  %1016 = vmatpush1.msra.mxu0 0.0
  %1017 = vmatprep.subr.mxu0 0.0
  %1018 = vmatpush1.msra.mxu0 0.0
  %1019 = vmatprep.subr.mxu0 0.0
  %1020 = vmatpush1.msra.mxu0 0.0
  %1021 = vmatprep.subr.mxu0 0.0
  %1022 = vmatpush1.msra.mxu0 0.0
  %1023 = vmatprep.subr.mxu0 0.0
  %1024 = vmatpush1.msra.mxu0 0.0
  %1025 = vmatprep.subr.mxu0 0.0
  %1026 = vmatpush1.msra.mxu0 0.0
  %1027 = vmatprep.subr.mxu0 0.0
  %1028 = vmatpush1.msra.mxu0 0.0
  %1029 = vmatprep.subr.mxu0 0.0
  %1030 = vmatpush1.msra.mxu0 0.0
  %1031 = vmatprep.subr.mxu0 0.0
  %1032 = vmatpush1.msra.mxu0 0.0
  %1033 = vmatprep.subr.mxu0 0.0
  %1034 = vmatpush1.msra.mxu0 %v1001
  %1035 = vmatprep.subr.mxu0 0.0
  %1036 = vmatpush2.msra.mxu0 0.0
  %1037 = vmatprep.subr.mxu0 0.0
  %1038 = vmatpush2.msra.mxu0 0.0
  %1039 = vmatprep.subr.mxu0 0.0
  %1040 = vmatpush2.msra.mxu0 0.0
  %1041 = vmatprep.subr.mxu0 0.0
  %1042 = vmatpush2.msra.mxu0 0.0
  %1043 = vmatprep.subr.mxu0 0.0
  %1044 = vmatpush2.msra.mxu0 0.0
  %1045 = vmatprep.subr.mxu0 0.0
  %1046 = vmatpush2.msra.mxu0 0.0
  %1047 = vmatprep.subr.mxu0 0.0
  %1048 = vmatpush2.msra.mxu0 0.0
  %1049 = vmatprep.subr.mxu0 0.0
  %1050 = vmatpush2.msra.mxu0 0.0
  %1051 = vmatprep.subr.mxu0 0.0
  %1052 = vmatpush2.msra.mxu0 0.0
  %1053 = vmatprep.subr.mxu0 0.0
  %1054 = vmatpush2.msra.mxu0 0.0
  %1055 = vmatprep.subr.mxu0 0.0
  %1056 = vmatpush2.msra.mxu0 0.0
  %1057 = vmatprep.subr.mxu0 0.0
  %1058 = vmatpush2.msra.mxu0 0.0
  %1059 = vmatprep.subr.mxu0 0.0
  %1060 = vmatpush2.msra.mxu0 0.0
  %1061 = vmatprep.subr.mxu0 0.0
  %1062 = vmatpush2.msra.mxu0 0.0
  %1063 = vmatprep.subr.mxu0 0.0
  %1064 = vmatpush2.msra.mxu0 0.0
  %1065 = vmatprep.subr.mxu0 0.0
  %1066 = vmatpush2.msra.mxu0 0.0
  %1067 = vmatprep.mubr.f32.mxu0 0.0
  %1068 = vmatmul.mubr.f32.gmra.mxu0 %v992
  %v1069 = vpop.f32.mrf.mxu0
  %v1070 = vadd.f32 0.0, %v1069
  %v1071 = vpop.f32.mrf.mxu0
  %1072 = vmatprep.mubr.f32.mxu0 0.0
  %1073 = vmatmul.mubr.f32.gmra.mxu0 %v994
  %v1074 = vpop.f32.mrf.mxu0
  %v1075 = vadd.f32 0.0, %v1074
  %v1076 = vpop.f32.mrf.mxu0
  %1077 = vmatprep.mubr.f32.mxu0 0.0
  %1078 = vmatmul.mubr.f32.gmra.mxu0 %v996
  %v1079 = vpop.f32.mrf.mxu0
  %v1080 = vadd.f32 0.0, %v1079
  %v1081 = vpop.f32.mrf.mxu0
  %1082 = vmatprep.mubr.f32.mxu0 0.0
  %1083 = vmatmul.mubr.f32.gmra.mxu0 %v998
  %v1084 = vpop.f32.mrf.mxu0
  %v1085 = vadd.f32 0.0, %v1084
  %v1086 = vpop.f32.mrf.mxu0
  %1087 = vdwg.mxu0
  %v1088 = vadd.f32 %v986, %v1070
  %v1089 = vadd.f32 %v987, %v1075
  %v1090 = vadd.f32 %v988, %v1080
  %v1091 = vadd.f32 %v989, %v1085
  %s1092 = scalar_lea.vmem %s5, 32
  %v1093 = vld [vmem:[%s1092] sm:$0xff]
  %v1094 = vld [vmem:[%s1092 + $0x8] sm:$0xff]
  %v1095 = vld [vmem:[%s1092 + $0x10] sm:$0xff]
  %v1096 = vld [vmem:[%s1092 + $0x18] sm:$0xff]
  %v1098 = vsel %vm41, %v665, 0
  %v1101 = vsel %vm41, %v670, 0
  %v1104 = vsel %vm41, %v675, 0
  %v1107 = vsel %vm41, %v680, 0
  %1109 = vmatprep.subr.mxu0 0.0
  %1110 = vmatpush1.msra.mxu0 0.0
  %1111 = vmatprep.subr.mxu0 0.0
  %1112 = vmatpush1.msra.mxu0 0.0
  %1113 = vmatprep.subr.mxu0 0.0
  %1114 = vmatpush1.msra.mxu0 0.0
  %1115 = vmatprep.subr.mxu0 0.0
  %1116 = vmatpush1.msra.mxu0 0.0
  %1117 = vmatprep.subr.mxu0 0.0
  %1118 = vmatpush1.msra.mxu0 0.0
  %1119 = vmatprep.subr.mxu0 0.0
  %1120 = vmatpush1.msra.mxu0 0.0
  %1121 = vmatprep.subr.mxu0 0.0
  %1122 = vmatpush1.msra.mxu0 0.0
  %1123 = vmatprep.subr.mxu0 0.0
  %1124 = vmatpush1.msra.mxu0 0.0
  %1125 = vmatprep.subr.mxu0 0.0
  %1126 = vmatpush1.msra.mxu0 0.0
  %1127 = vmatprep.subr.mxu0 0.0
  %1128 = vmatpush1.msra.mxu0 0.0
  %1129 = vmatprep.subr.mxu0 0.0
  %1130 = vmatpush1.msra.mxu0 0.0
  %1131 = vmatprep.subr.mxu0 0.0
  %1132 = vmatpush1.msra.mxu0 0.0
  %1133 = vmatprep.subr.mxu0 0.0
  %1134 = vmatpush1.msra.mxu0 %v1096
  %1135 = vmatprep.subr.mxu0 0.0
  %1136 = vmatpush1.msra.mxu0 %v1095
  %1137 = vmatprep.subr.mxu0 0.0
  %1138 = vmatpush1.msra.mxu0 %v1094
  %1139 = vmatprep.subr.mxu0 0.0
  %1140 = vmatpush1.msra.mxu0 %v1093
  %1141 = vmatprep.subr.mxu0 0.0
  %1142 = vmatpush2.msra.mxu0 0.0
  %1143 = vmatprep.subr.mxu0 0.0
  %1144 = vmatpush2.msra.mxu0 0.0
  %1145 = vmatprep.subr.mxu0 0.0
  %1146 = vmatpush2.msra.mxu0 0.0
  %1147 = vmatprep.subr.mxu0 0.0
  %1148 = vmatpush2.msra.mxu0 0.0
  %1149 = vmatprep.subr.mxu0 0.0
  %1150 = vmatpush2.msra.mxu0 0.0
  %1151 = vmatprep.subr.mxu0 0.0
  %1152 = vmatpush2.msra.mxu0 0.0
  %1153 = vmatprep.subr.mxu0 0.0
  %1154 = vmatpush2.msra.mxu0 0.0
  %1155 = vmatprep.subr.mxu0 0.0
  %1156 = vmatpush2.msra.mxu0 0.0
  %1157 = vmatprep.subr.mxu0 0.0
  %1158 = vmatpush2.msra.mxu0 0.0
  %1159 = vmatprep.subr.mxu0 0.0
  %1160 = vmatpush2.msra.mxu0 0.0
  %1161 = vmatprep.subr.mxu0 0.0
  %1162 = vmatpush2.msra.mxu0 0.0
  %1163 = vmatprep.subr.mxu0 0.0
  %1164 = vmatpush2.msra.mxu0 0.0
  %1165 = vmatprep.subr.mxu0 0.0
  %1166 = vmatpush2.msra.mxu0 0.0
  %1167 = vmatprep.subr.mxu0 0.0
  %1168 = vmatpush2.msra.mxu0 0.0
  %1169 = vmatprep.subr.mxu0 0.0
  %1170 = vmatpush2.msra.mxu0 0.0
  %1171 = vmatprep.subr.mxu0 0.0
  %1172 = vmatpush2.msra.mxu0 0.0
  %1173 = vmatprep.mubr.f32.mxu0 0.0
  %1174 = vmatmul.mubr.f32.gmra.mxu0 %v1098
  %v1175 = vpop.f32.mrf.mxu0
  %v1176 = vadd.f32 0.0, %v1175
  %v1177 = vpop.f32.mrf.mxu0
  %1178 = vmatprep.mubr.f32.mxu0 0.0
  %1179 = vmatmul.mubr.f32.gmra.mxu0 %v1101
  %v1180 = vpop.f32.mrf.mxu0
  %v1181 = vadd.f32 0.0, %v1180
  %v1182 = vpop.f32.mrf.mxu0
  %1183 = vmatprep.mubr.f32.mxu0 0.0
  %1184 = vmatmul.mubr.f32.gmra.mxu0 %v1104
  %v1185 = vpop.f32.mrf.mxu0
  %v1186 = vadd.f32 0.0, %v1185
  %v1187 = vpop.f32.mrf.mxu0
  %1188 = vmatprep.mubr.f32.mxu0 0.0
  %1189 = vmatmul.mubr.f32.gmra.mxu0 %v1107
  %v1190 = vpop.f32.mrf.mxu0
  %v1191 = vadd.f32 0.0, %v1190
  %v1192 = vpop.f32.mrf.mxu0
  %1193 = vdwg.mxu0
  %v1194 = vadd.f32 %v1088, %v1176
  %v1195 = vadd.f32 %v1089, %v1181
  %v1196 = vadd.f32 %v1090, %v1186
  %v1197 = vadd.f32 %v1091, %v1191
  %s1198 = scalar_lea.vmem %s4, 8
  %v1199 = vld [vmem:[%s1198] sm:$0xf]
  %v1200 = vsel %vm778, %v228, 0
  %v1202 = vsel %vm778, %v229, 0
  %v1204 = vsel %vm778, %v230, 0
  %v1206 = vsel %vm778, %v231, 0
  %v1209 = vsel %vm251, %v1199, 0
  %1211 = vmatprep.subr.mxu0 0.0
  %1212 = vmatpush1.msra.mxu0 0.0
  %1213 = vmatprep.subr.mxu0 0.0
  %1214 = vmatpush1.msra.mxu0 0.0
  %1215 = vmatprep.subr.mxu0 0.0
  %1216 = vmatpush1.msra.mxu0 0.0
  %1217 = vmatprep.subr.mxu0 0.0
  %1218 = vmatpush1.msra.mxu0 0.0
  %1219 = vmatprep.subr.mxu0 0.0
  %1220 = vmatpush1.msra.mxu0 0.0
  %1221 = vmatprep.subr.mxu0 0.0
  %1222 = vmatpush1.msra.mxu0 0.0
  %1223 = vmatprep.subr.mxu0 0.0
  %1224 = vmatpush1.msra.mxu0 0.0
  %1225 = vmatprep.subr.mxu0 0.0
  %1226 = vmatpush1.msra.mxu0 0.0
  %1227 = vmatprep.subr.mxu0 0.0
  %1228 = vmatpush1.msra.mxu0 0.0
  %1229 = vmatprep.subr.mxu0 0.0
  %1230 = vmatpush1.msra.mxu0 0.0
  %1231 = vmatprep.subr.mxu0 0.0
  %1232 = vmatpush1.msra.mxu0 0.0
  %1233 = vmatprep.subr.mxu0 0.0
  %1234 = vmatpush1.msra.mxu0 0.0
  %1235 = vmatprep.subr.mxu0 0.0
  %1236 = vmatpush1.msra.mxu0 0.0
  %1237 = vmatprep.subr.mxu0 0.0
  %1238 = vmatpush1.msra.mxu0 0.0
  %1239 = vmatprep.subr.mxu0 0.0
  %1240 = vmatpush1.msra.mxu0 0.0
  %1241 = vmatprep.subr.mxu0 0.0
  %1242 = vmatpush1.msra.mxu0 %v1209
  %1243 = vmatprep.subr.mxu0 0.0
  %1244 = vmatpush2.msra.mxu0 0.0
  %1245 = vmatprep.subr.mxu0 0.0
  %1246 = vmatpush2.msra.mxu0 0.0
  %1247 = vmatprep.subr.mxu0 0.0
  %1248 = vmatpush2.msra.mxu0 0.0
  %1249 = vmatprep.subr.mxu0 0.0
  %1250 = vmatpush2.msra.mxu0 0.0
  %1251 = vmatprep.subr.mxu0 0.0
  %1252 = vmatpush2.msra.mxu0 0.0
  %1253 = vmatprep.subr.mxu0 0.0
  %1254 = vmatpush2.msra.mxu0 0.0
  %1255 = vmatprep.subr.mxu0 0.0
  %1256 = vmatpush2.msra.mxu0 0.0
  %1257 = vmatprep.subr.mxu0 0.0
  %1258 = vmatpush2.msra.mxu0 0.0
  %1259 = vmatprep.subr.mxu0 0.0
  %1260 = vmatpush2.msra.mxu0 0.0
  %1261 = vmatprep.subr.mxu0 0.0
  %1262 = vmatpush2.msra.mxu0 0.0
  %1263 = vmatprep.subr.mxu0 0.0
  %1264 = vmatpush2.msra.mxu0 0.0
  %1265 = vmatprep.subr.mxu0 0.0
  %1266 = vmatpush2.msra.mxu0 0.0
  %1267 = vmatprep.subr.mxu0 0.0
  %1268 = vmatpush2.msra.mxu0 0.0
  %1269 = vmatprep.subr.mxu0 0.0
  %1270 = vmatpush2.msra.mxu0 0.0
  %1271 = vmatprep.subr.mxu0 0.0
  %1272 = vmatpush2.msra.mxu0 0.0
  %1273 = vmatprep.subr.mxu0 0.0
  %1274 = vmatpush2.msra.mxu0 0.0
  %1275 = vmatprep.mubr.f32.mxu0 0.0
  %1276 = vmatmul.mubr.f32.gmra.mxu0 %v1200
  %v1277 = vpop.f32.mrf.mxu0
  %v1278 = vadd.f32 0.0, %v1277
  %v1279 = vpop.f32.mrf.mxu0
  %1280 = vmatprep.mubr.f32.mxu0 0.0
  %1281 = vmatmul.mubr.f32.gmra.mxu0 %v1202
  %v1282 = vpop.f32.mrf.mxu0
  %v1283 = vadd.f32 0.0, %v1282
  %v1284 = vpop.f32.mrf.mxu0
  %1285 = vmatprep.mubr.f32.mxu0 0.0
  %1286 = vmatmul.mubr.f32.gmra.mxu0 %v1204
  %v1287 = vpop.f32.mrf.mxu0
  %v1288 = vadd.f32 0.0, %v1287
  %v1289 = vpop.f32.mrf.mxu0
  %1290 = vmatprep.mubr.f32.mxu0 0.0
  %1291 = vmatmul.mubr.f32.gmra.mxu0 %v1206
  %v1292 = vpop.f32.mrf.mxu0
  %v1293 = vadd.f32 0.0, %v1292
  %v1294 = vpop.f32.mrf.mxu0
  %1295 = vdwg.mxu0
  %v1296 = vadd.f32 %v1194, %v1278
  %v1297 = vadd.f32 %v1195, %v1283
  %v1298 = vadd.f32 %v1196, %v1288
  %v1299 = vadd.f32 %v1197, %v1293
  %s1300 = scalar_lea.vmem %s5, 64
  %v1301 = vld [vmem:[%s1300] sm:$0xff]
  %v1302 = vld [vmem:[%s1300 + $0x8] sm:$0xff]
  %v1303 = vld [vmem:[%s1300 + $0x10] sm:$0xff]
  %v1304 = vld [vmem:[%s1300 + $0x18] sm:$0xff]
  %v1306 = vsel %vm41, %v772, 0
  %v1309 = vsel %vm41, %v773, 0
  %v1312 = vsel %vm41, %v774, 0
  %v1315 = vsel %vm41, %v775, 0
  %1317 = vmatprep.subr.mxu0 0.0
  %1318 = vmatpush1.msra.mxu0 0.0
  %1319 = vmatprep.subr.mxu0 0.0
  %1320 = vmatpush1.msra.mxu0 0.0
  %1321 = vmatprep.subr.mxu0 0.0
  %1322 = vmatpush1.msra.mxu0 0.0
  %1323 = vmatprep.subr.mxu0 0.0
  %1324 = vmatpush1.msra.mxu0 0.0
  %1325 = vmatprep.subr.mxu0 0.0
  %1326 = vmatpush1.msra.mxu0 0.0
  %1327 = vmatprep.subr.mxu0 0.0
  %1328 = vmatpush1.msra.mxu0 0.0
  %1329 = vmatprep.subr.mxu0 0.0
  %1330 = vmatpush1.msra.mxu0 0.0
  %1331 = vmatprep.subr.mxu0 0.0
  %1332 = vmatpush1.msra.mxu0 0.0
  %1333 = vmatprep.subr.mxu0 0.0
  %1334 = vmatpush1.msra.mxu0 0.0
  %1335 = vmatprep.subr.mxu0 0.0
  %1336 = vmatpush1.msra.mxu0 0.0
  %1337 = vmatprep.subr.mxu0 0.0
  %1338 = vmatpush1.msra.mxu0 0.0
  %1339 = vmatprep.subr.mxu0 0.0
  %1340 = vmatpush1.msra.mxu0 0.0
  %1341 = vmatprep.subr.mxu0 0.0
  %1342 = vmatpush1.msra.mxu0 %v1304
  %1343 = vmatprep.subr.mxu0 0.0
  %1344 = vmatpush1.msra.mxu0 %v1303
  %1345 = vmatprep.subr.mxu0 0.0
  %1346 = vmatpush1.msra.mxu0 %v1302
  %1347 = vmatprep.subr.mxu0 0.0
  %1348 = vmatpush1.msra.mxu0 %v1301
  %1349 = vmatprep.subr.mxu0 0.0
  %1350 = vmatpush2.msra.mxu0 0.0
  %1351 = vmatprep.subr.mxu0 0.0
  %1352 = vmatpush2.msra.mxu0 0.0
  %1353 = vmatprep.subr.mxu0 0.0
  %1354 = vmatpush2.msra.mxu0 0.0
  %1355 = vmatprep.subr.mxu0 0.0
  %1356 = vmatpush2.msra.mxu0 0.0
  %1357 = vmatprep.subr.mxu0 0.0
  %1358 = vmatpush2.msra.mxu0 0.0
  %1359 = vmatprep.subr.mxu0 0.0
  %1360 = vmatpush2.msra.mxu0 0.0
  %1361 = vmatprep.subr.mxu0 0.0
  %1362 = vmatpush2.msra.mxu0 0.0
  %1363 = vmatprep.subr.mxu0 0.0
  %1364 = vmatpush2.msra.mxu0 0.0
  %1365 = vmatprep.subr.mxu0 0.0
  %1366 = vmatpush2.msra.mxu0 0.0
  %1367 = vmatprep.subr.mxu0 0.0
  %1368 = vmatpush2.msra.mxu0 0.0
  %1369 = vmatprep.subr.mxu0 0.0
  %1370 = vmatpush2.msra.mxu0 0.0
  %1371 = vmatprep.subr.mxu0 0.0
  %1372 = vmatpush2.msra.mxu0 0.0
  %1373 = vmatprep.subr.mxu0 0.0
  %1374 = vmatpush2.msra.mxu0 0.0
  %1375 = vmatprep.subr.mxu0 0.0
  %1376 = vmatpush2.msra.mxu0 0.0
  %1377 = vmatprep.subr.mxu0 0.0
  %1378 = vmatpush2.msra.mxu0 0.0
  %1379 = vmatprep.subr.mxu0 0.0
  %1380 = vmatpush2.msra.mxu0 0.0
  %1381 = vmatprep.mubr.f32.mxu0 0.0
  %1382 = vmatmul.mubr.f32.gmra.mxu0 %v1306
  %v1383 = vpop.f32.mrf.mxu0
  %v1384 = vadd.f32 0.0, %v1383
  %v1385 = vpop.f32.mrf.mxu0
  %1386 = vmatprep.mubr.f32.mxu0 0.0
  %1387 = vmatmul.mubr.f32.gmra.mxu0 %v1309
  %v1388 = vpop.f32.mrf.mxu0
  %v1389 = vadd.f32 0.0, %v1388
  %v1390 = vpop.f32.mrf.mxu0
  %1391 = vmatprep.mubr.f32.mxu0 0.0
  %1392 = vmatmul.mubr.f32.gmra.mxu0 %v1312
  %v1393 = vpop.f32.mrf.mxu0
  %v1394 = vadd.f32 0.0, %v1393
  %v1395 = vpop.f32.mrf.mxu0
  %1396 = vmatprep.mubr.f32.mxu0 0.0
  %1397 = vmatmul.mubr.f32.gmra.mxu0 %v1315
  %v1398 = vpop.f32.mrf.mxu0
  %v1399 = vadd.f32 0.0, %v1398
  %v1400 = vpop.f32.mrf.mxu0
  %1401 = vdwg.mxu0
  %v1402 = vadd.f32 %v1296, %v1384
  %v1403 = vadd.f32 %v1297, %v1389
  %v1404 = vadd.f32 %v1298, %v1394
  %v1405 = vadd.f32 %v1299, %v1399
  %v1406 = vtanh.pop %v1402
  %v1407 = vtanh.pop %v1403
  %v1408 = vtanh.pop %v1404
  %v1409 = vtanh.pop %v1405
  %1414 = vrot.lane.b32.xlu0 %v33, 32
  %v1415 = vpop.permute.xlu0 %1414
  %1416 = vrot.lane.b32.xlu0 %v34, 32
  %v1417 = vpop.permute.xlu0 %1416
  %1418 = vrot.lane.b32.xlu0 %v35, 32
  %v1419 = vpop.permute.xlu0 %1418
  %1420 = vrot.lane.b32.xlu0 %v36, 32
  %v1421 = vpop.permute.xlu0 %1420
  %v1426 = vmul.f32 %v587, %v1415
  %v1427 = vmul.f32 %v589, %v1417
  %v1428 = vmul.f32 %v591, %v1419
  %v1429 = vmul.f32 %v593, %v1421
  %v1430 = vsub.f32 1.0, %v587
  %v1431 = vsub.f32 1.0, %v589
  %v1432 = vsub.f32 1.0, %v591
  %v1433 = vsub.f32 1.0, %v593
  %1438 = vrot.lane.b32.xlu0 %v1406, 32
  %v1439 = vpop.permute.xlu0 %1438
  %1440 = vrot.lane.b32.xlu0 %v1407, 32
  %v1441 = vpop.permute.xlu0 %1440
  %1442 = vrot.lane.b32.xlu0 %v1408, 32
  %v1443 = vpop.permute.xlu0 %1442
  %1444 = vrot.lane.b32.xlu0 %v1409, 32
  %v1445 = vpop.permute.xlu0 %1444
  %v1450 = vmul.f32 %v1430, %v1439
  %v1451 = vmul.f32 %v1431, %v1441
  %v1452 = vmul.f32 %v1432, %v1443
  %v1453 = vmul.f32 %v1433, %v1445
  %v1454 = vadd.f32 %v1426, %v1450
  %v1455 = vadd.f32 %v1427, %v1451
  %v1456 = vadd.f32 %v1428, %v1452
  %v1457 = vadd.f32 %v1429, %v1453
  %1462 = vrot.lane.b32.xlu0 %v1454, 96
  %v1463 = vpop.permute.xlu0 %1462
  %1464 = vrot.lane.b32.xlu0 %v1455, 96
  %v1465 = vpop.permute.xlu0 %1464
  %1466 = vrot.lane.b32.xlu0 %v1456, 96
  %v1467 = vpop.permute.xlu0 %1466
  %1468 = vrot.lane.b32.xlu0 %v1457, 96
  %v1469 = vpop.permute.xlu0 %1468
  %1474 = vst.msk [vmem:[%s8] sm:$0xff] %vm41, %v1463
  %1475 = vst.msk [vmem:[%s8 + $0x8] sm:$0xff] %vm41, %v1465
  %1476 = vst.msk [vmem:[%s8 + $0x10] sm:$0xff] %vm41, %v1467
  %1477 = vst.msk [vmem:[%s8 + $0x18] sm:$0xff] %vm41, %v1469
  // Predicated region
  $region34: #{dcgru_cell.1} parent=0 // pred_check
    _
  $region35: #{dcgru_cell.1} parent=0 // pred_check_branch
    %1479 = sbr.rel (0) target = $region37
  $region36: #{dcgru_cell.1} parent=0 // pred_region
    _
  $region37: #{dcgru_cell.1} parent=0 // pred_fallthru
    _
  // Predicated region
  $region38: #{dcgru_cell.1} parent=0 // pred_check
    _
  $region39: #{dcgru_cell.1} parent=0 // pred_check_branch
    %1481 = sbr.rel (0) target = $region41
  $region40: #{dcgru_cell.1} parent=0 // pred_region
    _
  $region41: #{dcgru_cell.1} parent=0 // pred_fallthru
    _

</llo_original>
